<compile_context>
chip_gen: v5e
topology: v5e:2x2
jax: 0.10.0
libtpu: 0.0.40
codegen_flags: <defaults>
</compile_context>

<pallas_src>
import jax
import jax.numpy as jnp
from jax.experimental import pallas as pl
from jax.experimental.pallas import tpu as pltpu

STYLE_DIM = 64
NUM_DOMAINS = 2
BATCH = 256           # rows per call (amortizes per-step overhead)
MAX_TILE_N = 2048     # cap rows/step for very large batches


def style_transformer_kernel(s_ref, wdec_ref, bdec_ref,
                             wdom0_ref, wdomk_ref, bdomf_ref, out_ref):
    # s_ref:     (TN, D)          f32   style tile
    # wdec_ref:  (4, D, D)        bf16  decomposer weights (in, out)
    # bdec_ref:  (4, 1, D)        f32
    # wdom0_ref: (D, ND*D)        bf16  fused domain layer-0 weight (concat)
    # wdomk_ref: (3, ND*D, ND*D)  bf16  fused domain layers 1..3 (block-diag)
    # bdomf_ref: (4, 1, ND*D)     f32   fused domain biases
    # out_ref:   (TN, ND*D)       f32   per-domain results + s_unrelated
    s = s_ref[...]
    d = s.shape[1]
    nd = out_ref.shape[1] // d

    # ---- decomposer: 4 x (Linear + ReLU); bf16 operands, f32 accumulate ----
    h = s
    for l in range(4):
        z = jnp.dot(h.astype(jnp.bfloat16), wdec_ref[l],
                    preferred_element_type=jnp.float32)
        h = jnp.maximum(z + bdec_ref[l], 0.0)
    s_unrelated = h
    s_related = s - s_unrelated

    # ---- fused domain transformers: 4 lane-dense (128-wide) matmuls ----
    t = jnp.dot(s_related.astype(jnp.bfloat16), wdom0_ref[...],
                preferred_element_type=jnp.float32)
    t = jnp.maximum(t + bdomf_ref[0], 0.0)
    for l in range(3):
        t = jnp.dot(t.astype(jnp.bfloat16), wdomk_ref[l],
                    preferred_element_type=jnp.float32)
        t = t + bdomf_ref[l + 1]
        if l < 2:                        # ReLU after first three linears only
            t = jnp.maximum(t, 0.0)

    # ---- lane-dense store: all domains' s_tilde candidates at once ----
    out_ref[...] = t + jnp.concatenate([s_unrelated] * nd, axis=1)


def _fuse_domain_weights(wdom, bdom):
    """Pack (ND,4,D,D)/(ND,4,1,D) per-domain weights into lane-dense blocks."""
    nd, num_layers, d_in, _ = wdom.shape
    # layer 0: all domains see the same input -> concat along output dim
    w0f = jnp.concatenate([wdom[dd, 0] for dd in range(nd)], axis=1)      # (D, ND*D)
    # layers 1..3: keep domain paths independent -> block diagonal
    wkf = jnp.stack(
        [jax.scipy.linalg.block_diag(*[wdom[dd, l] for dd in range(nd)])
         for l in range(1, num_layers)], axis=0)                          # (3, ND*D, ND*D)
    bf = jnp.concatenate([bdom[dd] for dd in range(nd)], axis=-1)         # (4, 1, ND*D)
    return w0f, wkf, bf


def _num_row_blocks():
    """2-way row split only on v7x (2 TensorCores); 1 step otherwise."""
    try:
        kind = jax.devices()[0].device_kind.lower()
    except Exception:
        return 1
    return 2 if "v7" in kind else 1


def _pick_tile(n_pad, tile_n):
    if tile_n is None:
        tile_n = min(max(pl.cdiv(n_pad, _num_row_blocks()), 8), MAX_TILE_N)
    tn = min(tile_n, n_pad)
    return ((tn + 7) // 8) * 8           # multiple of 8 sublanes


def style_transformer(s, y, wdec, bdec, wdom, bdom, *, tile_n=None):
    n, d = s.shape
    nd = wdom.shape[0]

    # Host-side weight prep: fuse domain MLPs, cast matmul weights to bf16.
    w0f, wkf, bf = _fuse_domain_weights(wdom, bdom)
    wdec_b = wdec.astype(jnp.bfloat16)
    bdec_f = bdec.astype(jnp.float32)
    w0f_b = w0f.astype(jnp.bfloat16)
    wkf_b = wkf.astype(jnp.bfloat16)
    bf_f = bf.astype(jnp.float32)

    # Pad rows to a multiple of 8 (sublane granularity).
    n_pad = ((n + 7) // 8) * 8
    s_pad = s if n_pad == n else jnp.pad(s, ((0, n_pad - n), (0, 0)))

    tn = _pick_tile(n_pad, tile_n)
    grid = (pl.cdiv(n_pad, tn),)

    flops = (2 * n_pad * d * d * 4
             + 2 * n_pad * d * (nd * d)
             + 2 * n_pad * (nd * d) * (nd * d) * 3)
    bytes_accessed = (4 * (s_pad.size + bdec_f.size + bf_f.size + n_pad * nd * d)
                      + 2 * (wdec_b.size + w0f_b.size + wkf_b.size))

    full = pl.pallas_call(
        style_transformer_kernel,
        out_shape=jax.ShapeDtypeStruct((n_pad, nd * d), jnp.float32),
        grid_spec=pltpu.PrefetchScalarGridSpec(
            num_scalar_prefetch=0,
            grid=grid,
            in_specs=[
                pl.BlockSpec((tn, d), lambda i: (i, 0)),                  # s
                pl.BlockSpec(wdec_b.shape, lambda i: (0, 0, 0)),          # wdec (resident)
                pl.BlockSpec(bdec_f.shape, lambda i: (0, 0, 0)),          # bdec (resident)
                pl.BlockSpec(w0f_b.shape, lambda i: (0, 0)),              # fused layer-0 W
                pl.BlockSpec(wkf_b.shape, lambda i: (0, 0, 0)),           # fused layers 1..3 W
                pl.BlockSpec(bf_f.shape, lambda i: (0, 0, 0)),            # fused biases
            ],
            out_specs=pl.BlockSpec((tn, nd * d), lambda i: (i, 0)),       # lane-dense
        ),
        compiler_params=pltpu.CompilerParams(
            dimension_semantics=("parallel",)),
        cost_estimate=pl.CostEstimate(flops=flops, transcendentals=0,
                                      bytes_accessed=int(bytes_accessed)),
    )(s_pad, wdec_b, bdec_f, w0f_b, wkf_b, bf_f)

    # Per-row domain pick (tiny XLA gather) + strip row padding.
    full = full[:n].reshape(n, nd, d)
    return full[jnp.arange(n), y.astype(jnp.int32)]


def reference(s, y, wdec, bdec, wdom, bdom):
    h = s
    for l in range(4):
        h = jnp.maximum(h @ wdec[l] + bdec[l, 0], 0.0)
    s_unrelated = h
    s_related = s - s_unrelated
    outs = []
    for dom in range(wdom.shape[0]):
        t = s_related
        for l in range(4):
            t = t @ wdom[dom, l] + bdom[dom, l, 0]
            if l < 3:
                t = jnp.maximum(t, 0.0)
        outs.append(t)
    out = jnp.stack(outs, axis=1)                      # (N, num_domains, D)
    sel = out[jnp.arange(s.shape[0]), y]               # (N, D)
    return sel + s_unrelated


if __name__ == "__main__":
    key = jax.random.PRNGKey(0)
    ks = jax.random.split(key, 6)

    s = jax.random.normal(ks[0], (BATCH, STYLE_DIM), dtype=jnp.float32)
    y = jax.random.randint(ks[1], (BATCH,), 0, NUM_DOMAINS, dtype=jnp.int32)

    scale = 1.0 / jnp.sqrt(STYLE_DIM)
    wdec = jax.random.normal(ks[2], (4, STYLE_DIM, STYLE_DIM), jnp.float32) * scale
    bdec = jax.random.normal(ks[3], (4, 1, STYLE_DIM), jnp.float32) * 0.1
    wdom = jax.random.normal(ks[4], (NUM_DOMAINS, 4, STYLE_DIM, STYLE_DIM),
                             jnp.float32) * scale
    bdom = jax.random.normal(ks[5], (NUM_DOMAINS, 4, 1, STYLE_DIM),
                             jnp.float32) * 0.1

    out = style_transformer(s, y, wdec, bdec, wdom, bdom)
    out = jax.block_until_ready(out)

    ref = reference(s, y, wdec, bdec, wdom, bdom)
    assert out.shape == (BATCH, STYLE_DIM)
    # Tolerance accounts for bf16 MXU operands (f32 accumulation) in the kernel.
    assert jnp.allclose(out, ref, atol=5e-2, rtol=5e-2), (
        "max abs err = %e" % float(jnp.max(jnp.abs(out - ref))))

    print("KERNEL_OK")
</pallas_src>

<mosaic_0001>
module attributes {stable_mosaic.version = 11 : i64} {
  func.func @style_transformer_kernel(%arg0: i32, %arg1: memref<256x64xf32, #tpu.memory_space<vmem>>, %arg2: memref<4x64x64xbf16, #tpu.memory_space<vmem>>, %arg3: memref<4x1x64xf32, #tpu.memory_space<vmem>>, %arg4: memref<64x128xbf16, #tpu.memory_space<vmem>>, %arg5: memref<3x128x128xbf16, #tpu.memory_space<vmem>>, %arg6: memref<4x1x128xf32, #tpu.memory_space<vmem>>, %arg7: memref<256x128xf32, #tpu.memory_space<vmem>>) attributes {dimension_semantics = [#tpu.dimension_semantics<parallel>], iteration_bounds = array<i64: 1>, scalar_prefetch = 0 : i64, scratch_operands = 0 : i64, tpu.core_type = #tpu.core_type<tc>, window_params = [{transform_indices = @transform_0, window_bounds = array<i64: 256, 64>}, {pipeline_mode = #tpu.pipeline_mode<synchronous>, transform_indices = @transform_1, window_bounds = array<i64: 4, 64, 64>}, {pipeline_mode = #tpu.pipeline_mode<synchronous>, transform_indices = @transform_2, window_bounds = array<i64: 4, 1, 64>}, {pipeline_mode = #tpu.pipeline_mode<synchronous>, transform_indices = @transform_3, window_bounds = array<i64: 64, 128>}, {pipeline_mode = #tpu.pipeline_mode<synchronous>, transform_indices = @transform_4, window_bounds = array<i64: 3, 128, 128>}, {pipeline_mode = #tpu.pipeline_mode<synchronous>, transform_indices = @transform_5, window_bounds = array<i64: 4, 1, 128>}, {transform_indices = @transform_6, window_bounds = array<i64: 256, 128>}]} {
    %c0 = arith.constant 0 : index
    %c0_0 = arith.constant 0 : index
    %0 = vector.load %arg1[%c0, %c0_0] : memref<256x64xf32, #tpu.memory_space<vmem>>, vector<256x64xf32>
    %1 = arith.truncf %0 : vector<256x64xf32> to vector<256x64xbf16>
    %c0_1 = arith.constant 0 : index
    %c0_2 = arith.constant 0 : index
    %c0_3 = arith.constant 0 : index
    %2 = vector.load %arg2[%c0_1, %c0_2, %c0_3] : memref<4x64x64xbf16, #tpu.memory_space<vmem>>, vector<1x64x64xbf16>
    %3 = vector.shape_cast %2 : vector<1x64x64xbf16> to vector<64x64xbf16>
    %cst = arith.constant dense<0.000000e+00> : vector<256x64xf32>
    %4 = tpu.matmul %1, %3, %cst {dimension_numbers = #tpu.dot_dimension_numbers<[1], [0], [0], [1], [0, 0, 1, 1], [], []>} : vector<256x64xbf16>, vector<64x64xbf16>, vector<256x64xf32> -> vector<256x64xf32>
    %c0_4 = arith.constant 0 : index
    %c0_5 = arith.constant 0 : index
    %c0_6 = arith.constant 0 : index
    %5 = vector.load %arg3[%c0_4, %c0_5, %c0_6] : memref<4x1x64xf32, #tpu.memory_space<vmem>>, vector<1x1x64xf32>
    %6 = vector.shape_cast %5 : vector<1x1x64xf32> to vector<1x64xf32>
    %7 = vector.broadcast %6 : vector<1x64xf32> to vector<256x64xf32>
    %8 = arith.addf %4, %7 : vector<256x64xf32>
    %cst_7 = arith.constant 0.000000e+00 : f32
    %9 = vector.broadcast %cst_7 : f32 to vector<256x64xf32>
    %10 = arith.maximumf %8, %9 : vector<256x64xf32>
    %11 = arith.truncf %10 : vector<256x64xf32> to vector<256x64xbf16>
    %c1 = arith.constant 1 : index
    %c0_8 = arith.constant 0 : index
    %c0_9 = arith.constant 0 : index
    %12 = vector.load %arg2[%c1, %c0_8, %c0_9] : memref<4x64x64xbf16, #tpu.memory_space<vmem>>, vector<1x64x64xbf16>
    %13 = vector.shape_cast %12 : vector<1x64x64xbf16> to vector<64x64xbf16>
    %cst_10 = arith.constant dense<0.000000e+00> : vector<256x64xf32>
    %14 = tpu.matmul %11, %13, %cst_10 {dimension_numbers = #tpu.dot_dimension_numbers<[1], [0], [0], [1], [0, 0, 1, 1], [], []>} : vector<256x64xbf16>, vector<64x64xbf16>, vector<256x64xf32> -> vector<256x64xf32>
    %c1_11 = arith.constant 1 : index
    %c0_12 = arith.constant 0 : index
    %c0_13 = arith.constant 0 : index
    %15 = vector.load %arg3[%c1_11, %c0_12, %c0_13] : memref<4x1x64xf32, #tpu.memory_space<vmem>>, vector<1x1x64xf32>
    %16 = vector.shape_cast %15 : vector<1x1x64xf32> to vector<1x64xf32>
    %17 = vector.broadcast %16 : vector<1x64xf32> to vector<256x64xf32>
    %18 = arith.addf %14, %17 : vector<256x64xf32>
    %cst_14 = arith.constant 0.000000e+00 : f32
    %19 = vector.broadcast %cst_14 : f32 to vector<256x64xf32>
    %20 = arith.maximumf %18, %19 : vector<256x64xf32>
    %21 = arith.truncf %20 : vector<256x64xf32> to vector<256x64xbf16>
    %c2 = arith.constant 2 : index
    %c0_15 = arith.constant 0 : index
    %c0_16 = arith.constant 0 : index
    %22 = vector.load %arg2[%c2, %c0_15, %c0_16] : memref<4x64x64xbf16, #tpu.memory_space<vmem>>, vector<1x64x64xbf16>
    %23 = vector.shape_cast %22 : vector<1x64x64xbf16> to vector<64x64xbf16>
    %cst_17 = arith.constant dense<0.000000e+00> : vector<256x64xf32>
    %24 = tpu.matmul %21, %23, %cst_17 {dimension_numbers = #tpu.dot_dimension_numbers<[1], [0], [0], [1], [0, 0, 1, 1], [], []>} : vector<256x64xbf16>, vector<64x64xbf16>, vector<256x64xf32> -> vector<256x64xf32>
    %c2_18 = arith.constant 2 : index
    %c0_19 = arith.constant 0 : index
    %c0_20 = arith.constant 0 : index
    %25 = vector.load %arg3[%c2_18, %c0_19, %c0_20] : memref<4x1x64xf32, #tpu.memory_space<vmem>>, vector<1x1x64xf32>
    %26 = vector.shape_cast %25 : vector<1x1x64xf32> to vector<1x64xf32>
    %27 = vector.broadcast %26 : vector<1x64xf32> to vector<256x64xf32>
    %28 = arith.addf %24, %27 : vector<256x64xf32>
    %cst_21 = arith.constant 0.000000e+00 : f32
    %29 = vector.broadcast %cst_21 : f32 to vector<256x64xf32>
    %30 = arith.maximumf %28, %29 : vector<256x64xf32>
    %31 = arith.truncf %30 : vector<256x64xf32> to vector<256x64xbf16>
    %c3 = arith.constant 3 : index
    %c0_22 = arith.constant 0 : index
    %c0_23 = arith.constant 0 : index
    %32 = vector.load %arg2[%c3, %c0_22, %c0_23] : memref<4x64x64xbf16, #tpu.memory_space<vmem>>, vector<1x64x64xbf16>
    %33 = vector.shape_cast %32 : vector<1x64x64xbf16> to vector<64x64xbf16>
    %cst_24 = arith.constant dense<0.000000e+00> : vector<256x64xf32>
    %34 = tpu.matmul %31, %33, %cst_24 {dimension_numbers = #tpu.dot_dimension_numbers<[1], [0], [0], [1], [0, 0, 1, 1], [], []>} : vector<256x64xbf16>, vector<64x64xbf16>, vector<256x64xf32> -> vector<256x64xf32>
    %c3_25 = arith.constant 3 : index
    %c0_26 = arith.constant 0 : index
    %c0_27 = arith.constant 0 : index
    %35 = vector.load %arg3[%c3_25, %c0_26, %c0_27] : memref<4x1x64xf32, #tpu.memory_space<vmem>>, vector<1x1x64xf32>
    %36 = vector.shape_cast %35 : vector<1x1x64xf32> to vector<1x64xf32>
    %37 = vector.broadcast %36 : vector<1x64xf32> to vector<256x64xf32>
    %38 = arith.addf %34, %37 : vector<256x64xf32>
    %cst_28 = arith.constant 0.000000e+00 : f32
    %39 = vector.broadcast %cst_28 : f32 to vector<256x64xf32>
    %40 = arith.maximumf %38, %39 : vector<256x64xf32>
    %41 = arith.subf %0, %40 : vector<256x64xf32>
    %42 = arith.truncf %41 : vector<256x64xf32> to vector<256x64xbf16>
    %c0_29 = arith.constant 0 : index
    %c0_30 = arith.constant 0 : index
    %43 = vector.load %arg4[%c0_29, %c0_30] : memref<64x128xbf16, #tpu.memory_space<vmem>>, vector<64x128xbf16>
    %cst_31 = arith.constant dense<0.000000e+00> : vector<256x128xf32>
    %44 = tpu.matmul %42, %43, %cst_31 {dimension_numbers = #tpu.dot_dimension_numbers<[1], [0], [0], [1], [0, 0, 1, 1], [], []>} : vector<256x64xbf16>, vector<64x128xbf16>, vector<256x128xf32> -> vector<256x128xf32>
    %c0_32 = arith.constant 0 : index
    %c0_33 = arith.constant 0 : index
    %c0_34 = arith.constant 0 : index
    %45 = vector.load %arg6[%c0_32, %c0_33, %c0_34] : memref<4x1x128xf32, #tpu.memory_space<vmem>>, vector<1x1x128xf32>
    %46 = vector.shape_cast %45 : vector<1x1x128xf32> to vector<1x128xf32>
    %47 = vector.broadcast %46 : vector<1x128xf32> to vector<256x128xf32>
    %48 = arith.addf %44, %47 : vector<256x128xf32>
    %cst_35 = arith.constant 0.000000e+00 : f32
    %49 = vector.broadcast %cst_35 : f32 to vector<256x128xf32>
    %50 = arith.maximumf %48, %49 : vector<256x128xf32>
    %51 = arith.truncf %50 : vector<256x128xf32> to vector<256x128xbf16>
    %c0_36 = arith.constant 0 : index
    %c0_37 = arith.constant 0 : index
    %c0_38 = arith.constant 0 : index
    %52 = vector.load %arg5[%c0_36, %c0_37, %c0_38] : memref<3x128x128xbf16, #tpu.memory_space<vmem>>, vector<1x128x128xbf16>
    %53 = vector.shape_cast %52 : vector<1x128x128xbf16> to vector<128x128xbf16>
    %cst_39 = arith.constant dense<0.000000e+00> : vector<256x128xf32>
    %54 = tpu.matmul %51, %53, %cst_39 {dimension_numbers = #tpu.dot_dimension_numbers<[1], [0], [0], [1], [0, 0, 1, 1], [], []>} : vector<256x128xbf16>, vector<128x128xbf16>, vector<256x128xf32> -> vector<256x128xf32>
    %c1_40 = arith.constant 1 : index
    %c0_41 = arith.constant 0 : index
    %c0_42 = arith.constant 0 : index
    %55 = vector.load %arg6[%c1_40, %c0_41, %c0_42] : memref<4x1x128xf32, #tpu.memory_space<vmem>>, vector<1x1x128xf32>
    %56 = vector.shape_cast %55 : vector<1x1x128xf32> to vector<1x128xf32>
    %57 = vector.broadcast %56 : vector<1x128xf32> to vector<256x128xf32>
    %58 = arith.addf %54, %57 : vector<256x128xf32>
    %cst_43 = arith.constant 0.000000e+00 : f32
    %59 = vector.broadcast %cst_43 : f32 to vector<256x128xf32>
    %60 = arith.maximumf %58, %59 : vector<256x128xf32>
    %61 = arith.truncf %60 : vector<256x128xf32> to vector<256x128xbf16>
    %c1_44 = arith.constant 1 : index
    %c0_45 = arith.constant 0 : index
    %c0_46 = arith.constant 0 : index
    %62 = vector.load %arg5[%c1_44, %c0_45, %c0_46] : memref<3x128x128xbf16, #tpu.memory_space<vmem>>, vector<1x128x128xbf16>
    %63 = vector.shape_cast %62 : vector<1x128x128xbf16> to vector<128x128xbf16>
    %cst_47 = arith.constant dense<0.000000e+00> : vector<256x128xf32>
    %64 = tpu.matmul %61, %63, %cst_47 {dimension_numbers = #tpu.dot_dimension_numbers<[1], [0], [0], [1], [0, 0, 1, 1], [], []>} : vector<256x128xbf16>, vector<128x128xbf16>, vector<256x128xf32> -> vector<256x128xf32>
    %c2_48 = arith.constant 2 : index
    %c0_49 = arith.constant 0 : index
    %c0_50 = arith.constant 0 : index
    %65 = vector.load %arg6[%c2_48, %c0_49, %c0_50] : memref<4x1x128xf32, #tpu.memory_space<vmem>>, vector<1x1x128xf32>
    %66 = vector.shape_cast %65 : vector<1x1x128xf32> to vector<1x128xf32>
    %67 = vector.broadcast %66 : vector<1x128xf32> to vector<256x128xf32>
    %68 = arith.addf %64, %67 : vector<256x128xf32>
    %cst_51 = arith.constant 0.000000e+00 : f32
    %69 = vector.broadcast %cst_51 : f32 to vector<256x128xf32>
    %70 = arith.maximumf %68, %69 : vector<256x128xf32>
    %71 = arith.truncf %70 : vector<256x128xf32> to vector<256x128xbf16>
    %c2_52 = arith.constant 2 : index
    %c0_53 = arith.constant 0 : index
    %c0_54 = arith.constant 0 : index
    %72 = vector.load %arg5[%c2_52, %c0_53, %c0_54] : memref<3x128x128xbf16, #tpu.memory_space<vmem>>, vector<1x128x128xbf16>
    %73 = vector.shape_cast %72 : vector<1x128x128xbf16> to vector<128x128xbf16>
    %cst_55 = arith.constant dense<0.000000e+00> : vector<256x128xf32>
    %74 = tpu.matmul %71, %73, %cst_55 {dimension_numbers = #tpu.dot_dimension_numbers<[1], [0], [0], [1], [0, 0, 1, 1], [], []>} : vector<256x128xbf16>, vector<128x128xbf16>, vector<256x128xf32> -> vector<256x128xf32>
    %c3_56 = arith.constant 3 : index
    %c0_57 = arith.constant 0 : index
    %c0_58 = arith.constant 0 : index
    %75 = vector.load %arg6[%c3_56, %c0_57, %c0_58] : memref<4x1x128xf32, #tpu.memory_space<vmem>>, vector<1x1x128xf32>
    %76 = vector.shape_cast %75 : vector<1x1x128xf32> to vector<1x128xf32>
    %77 = vector.broadcast %76 : vector<1x128xf32> to vector<256x128xf32>
    %78 = arith.addf %74, %77 : vector<256x128xf32>
    %79 = tpu.concatenate %40, %40 in 1 : vector<256x64xf32>, vector<256x64xf32> -> vector<256x128xf32>
    %80 = arith.addf %78, %79 : vector<256x128xf32>
    %c0_59 = arith.constant 0 : index
    %c0_60 = arith.constant 0 : index
    %81 = vector.load %arg7[%c0_59, %c0_60] : memref<256x128xf32, #tpu.memory_space<vmem>>, vector<256x128xf32>
    tpu.vector_store %arg7[%c0_59, %c0_60], %80 {strides = array<i32>} : memref<256x128xf32, #tpu.memory_space<vmem>>, vector<256x128xf32>,
    return
  }
  func.func @transform_0(%arg0: i32) -> (i32, i32) {
    %c0_i32 = arith.constant 0 : i32
    %c0_i32_0 = arith.constant 0 : i32
    return %arg0, %c0_i32 : i32, i32
  }
  func.func @transform_1(%arg0: i32) -> (i32, i32, i32) {
    %c0_i32 = arith.constant 0 : i32
    %c0_i32_0 = arith.constant 0 : i32
    %c0_i32_1 = arith.constant 0 : i32
    %c0_i32_2 = arith.constant 0 : i32
    return %c0_i32, %c0_i32_0, %c0_i32_1 : i32, i32, i32
  }
  func.func @transform_2(%arg0: i32) -> (i32, i32, i32) {
    %c0_i32 = arith.constant 0 : i32
    %c0_i32_0 = arith.constant 0 : i32
    %c0_i32_1 = arith.constant 0 : i32
    %c0_i32_2 = arith.constant 0 : i32
    return %c0_i32, %c0_i32_0, %c0_i32_1 : i32, i32, i32
  }
  func.func @transform_3(%arg0: i32) -> (i32, i32) {
    %c0_i32 = arith.constant 0 : i32
    %c0_i32_0 = arith.constant 0 : i32
    %c0_i32_1 = arith.constant 0 : i32
    return %c0_i32, %c0_i32_0 : i32, i32
  }
  func.func @transform_4(%arg0: i32) -> (i32, i32, i32) {
    %c0_i32 = arith.constant 0 : i32
    %c0_i32_0 = arith.constant 0 : i32
    %c0_i32_1 = arith.constant 0 : i32
    %c0_i32_2 = arith.constant 0 : i32
    return %c0_i32, %c0_i32_0, %c0_i32_1 : i32, i32, i32
  }
  func.func @transform_5(%arg0: i32) -> (i32, i32, i32) {
    %c0_i32 = arith.constant 0 : i32
    %c0_i32_0 = arith.constant 0 : i32
    %c0_i32_1 = arith.constant 0 : i32
    %c0_i32_2 = arith.constant 0 : i32
    return %c0_i32, %c0_i32_0, %c0_i32_1 : i32, i32, i32
  }
  func.func @transform_6(%arg0: i32) -> (i32, i32) {
    %c0_i32 = arith.constant 0 : i32
    %c0_i32_0 = arith.constant 0 : i32
    return %arg0, %c0_i32 : i32, i32
  }
}

</mosaic_0001>

<llo_original>
// kernel: tpu_custom_call.1
$region0: #{tpu_custom_call.1}
  #allocation0 [shape = 'u32[]', space=smem, size = 0x4, offset = 0x4, fixed_abs, tag = 'smem constant byte address 0x4 - core index']
  #allocation1 [shape = 'u32[72,128]{1,0:T(1,128)}', space=vmem, size = 0x9000, scoped, tag = 'internal scratch']
  %s0 = inlined_call_operand.vmem [shape: f32[256,64], index: 0, kind: input, shape index: {}]
  %s1 = inlined_call_operand.vmem [shape: bf16[4,64,64], index: 1, kind: input, shape index: {}]
  %s2 = inlined_call_operand.vmem [shape: f32[4,1,64], index: 2, kind: input, shape index: {}]
  %s3 = inlined_call_operand.vmem [shape: bf16[64,128], index: 3, kind: input, shape index: {}]
  %s4 = inlined_call_operand.vmem [shape: bf16[3,128,128], index: 4, kind: input, shape index: {}]
  %s5 = inlined_call_operand.vmem [shape: f32[4,1,128], index: 5, kind: input, shape index: {}]
  %s6 = inlined_call_operand.hbm [shape: f32[256,128], index: 6, kind: output, shape index: {}]
  %s7 = sld [smem:[#allocation0]]
  $region34: #{tpu_custom_call.1} parent=0
    _
  %s9 = ssub.s32 1, %s7
  %s10 = scalar_select 0, %s9, %s7
  $region1: #{tpu_custom_call.1} parent=0
    #allocation2 [shape = 'u8[131072]{0}', space=vmem, size = 0x20000, scoped, tag = 'output window, operand 0, single buffered']
    #allocation3 [shape = 's32[1]{0}', space=sflag, size = 0x4, scoped, tag = 'scoped memory for tpu_custom_call.1']
    %11 = vsyncpa [#allocation3], 0
    // Predicated region
    $region2: #{tpu_custom_call.1} parent=1 // pred_check
      _
    $region3: #{tpu_custom_call.1} parent=1 // pred_check_branch
      %13 = sbr.rel (0) target = $region5
    $region4: #{tpu_custom_call.1} parent=1 // pred_region
      _
    $region5: #{tpu_custom_call.1} parent=1 // pred_fallthru
      _
    // Predicated region
    $region6: #{tpu_custom_call.1} parent=1 // pred_check
      _
    $region7: #{tpu_custom_call.1} parent=1 // pred_check_branch
      %15 = sbr.rel (0) target = $region9
    $region8: #{tpu_custom_call.1} parent=1 // pred_region
      _
    $region9: #{tpu_custom_call.1} parent=1 // pred_fallthru
      _
    // Predicated region
    $region10: #{tpu_custom_call.1} parent=1 // pred_check
      _
    $region11: #{tpu_custom_call.1} parent=1 // pred_check_branch
      %17 = sbr.rel (0) target = $region13
    $region12: #{tpu_custom_call.1} parent=1 // pred_region
      _
    $region13: #{tpu_custom_call.1} parent=1 // pred_fallthru
      _
    // Predicated region
    $region14: #{tpu_custom_call.1} parent=1 // pred_check
      _
    $region15: #{tpu_custom_call.1} parent=1 // pred_check_branch
      %19 = sbr.rel (0) target = $region17
    $region16: #{tpu_custom_call.1} parent=1 // pred_region
      _
    $region17: #{tpu_custom_call.1} parent=1 // pred_fallthru
      _
    // Predicated region
    $region18: #{tpu_custom_call.1} parent=1 // pred_check
      _
    $region19: #{tpu_custom_call.1} parent=1 // pred_check_branch
      %21 = sbr.rel (0) target = $region21
    $region20: #{tpu_custom_call.1} parent=1 // pred_region
      _
    $region21: #{tpu_custom_call.1} parent=1 // pred_fallthru
      _
    // Predicated region
    $region22: #{tpu_custom_call.1} parent=1 // pred_check
      _
    $region23: #{tpu_custom_call.1} parent=1 // pred_check_branch
      %23 = sbr.rel (0) target = $region25
    $region24: #{tpu_custom_call.1} parent=1 // pred_region
      _
    $region25: #{tpu_custom_call.1} parent=1 // pred_fallthru
      _
    %v25 = vld [vmem:[%s0] sm:$0xff]
    %v26 = vld [vmem:[%s0 + $0x8] sm:$0xff]
    %v27 = vld [vmem:[%s0 + $0x10] sm:$0xff]
    %v28 = vld [vmem:[%s0 + $0x18] sm:$0xff]
    %v29 = vld [vmem:[%s0 + $0x20] sm:$0xff]
    %v30 = vld [vmem:[%s0 + $0x28] sm:$0xff]
    %v31 = vld [vmem:[%s0 + $0x30] sm:$0xff]
    %v32 = vld [vmem:[%s0 + $0x38] sm:$0xff]
    %v33 = vld [vmem:[%s0 + $0x40] sm:$0xff]
    %v34 = vld [vmem:[%s0 + $0x48] sm:$0xff]
    %v35 = vld [vmem:[%s0 + $0x50] sm:$0xff]
    %v36 = vld [vmem:[%s0 + $0x58] sm:$0xff]
    %v37 = vld [vmem:[%s0 + $0x60] sm:$0xff]
    %v38 = vld [vmem:[%s0 + $0x68] sm:$0xff]
    %v39 = vld [vmem:[%s0 + $0x70] sm:$0xff]
    %v40 = vld [vmem:[%s0 + $0x78] sm:$0xff]
    %v41 = vld [vmem:[%s0 + $0x80] sm:$0xff]
    %v42 = vld [vmem:[%s0 + $0x88] sm:$0xff]
    %v43 = vld [vmem:[%s0 + $0x90] sm:$0xff]
    %v44 = vld [vmem:[%s0 + $0x98] sm:$0xff]
    %v45 = vld [vmem:[%s0 + $0xa0] sm:$0xff]
    %v46 = vld [vmem:[%s0 + $0xa8] sm:$0xff]
    %v47 = vld [vmem:[%s0 + $0xb0] sm:$0xff]
    %v48 = vld [vmem:[%s0 + $0xb8] sm:$0xff]
    %v49 = vld [vmem:[%s0 + $0xc0] sm:$0xff]
    %v50 = vld [vmem:[%s0 + $0xc8] sm:$0xff]
    %v51 = vld [vmem:[%s0 + $0xd0] sm:$0xff]
    %v52 = vld [vmem:[%s0 + $0xd8] sm:$0xff]
    %v53 = vld [vmem:[%s0 + $0xe0] sm:$0xff]
    %v54 = vld [vmem:[%s0 + $0xe8] sm:$0xff]
    %v55 = vld [vmem:[%s0 + $0xf0] sm:$0xff]
    %v56 = vld [vmem:[%s0 + $0xf8] sm:$0xff]
    %v57 = vpack.c.bf16 %v26, %v25
    %v58 = vpack.c.bf16 %v28, %v27
    %v59 = vpack.c.bf16 %v30, %v29
    %v60 = vpack.c.bf16 %v32, %v31
    %v61 = vpack.c.bf16 %v34, %v33
    %v62 = vpack.c.bf16 %v36, %v35
    %v63 = vpack.c.bf16 %v38, %v37
    %v64 = vpack.c.bf16 %v40, %v39
    %v65 = vpack.c.bf16 %v42, %v41
    %v66 = vpack.c.bf16 %v44, %v43
    %v67 = vpack.c.bf16 %v46, %v45
    %v68 = vpack.c.bf16 %v48, %v47
    %v69 = vpack.c.bf16 %v50, %v49
    %v70 = vpack.c.bf16 %v52, %v51
    %v71 = vpack.c.bf16 %v54, %v53
    %v72 = vpack.c.bf16 %v56, %v55
    %v73 = vld [vmem:[%s1] sm:$0xf]
    %v74 = vld [vmem:[%s1 + $0x4] sm:$0xf]
    %v75 = vld [vmem:[%s1 + $0x8] sm:$0xf]
    %v76 = vld [vmem:[%s1 + $0xc] sm:$0xf]
    %v77 = vld [vmem:[%s1 + $0x10] sm:$0xf]
    %v78 = vld [vmem:[%s1 + $0x14] sm:$0xf]
    %v79 = vld [vmem:[%s1 + $0x18] sm:$0xf]
    %v80 = vld [vmem:[%s1 + $0x1c] sm:$0xf]
    %v81 = vld [vmem:[%s2] sm:$0x1]
    %v83 = vperm.slane %v81, 0
    %v93 = vunpack.c.l.b16 %v73
    %v94 = vunpack.c.l.b16 %v74
    %v95 = vunpack.c.l.b16 %v75
    %v96 = vunpack.c.l.b16 %v76
    %v97 = vunpack.c.l.b16 %v77
    %v98 = vunpack.c.l.b16 %v78
    %v99 = vunpack.c.l.b16 %v79
    %v100 = vunpack.c.l.b16 %v80
    %v101 = vpack.c.b16 %v94, %v93
    %v102 = vpack.c.b16 %v96, %v95
    %v103 = vpack.c.b16 %v98, %v97
    %v104 = vpack.c.b16 %v100, %v99
    %vm109 = vcmask 523264
    %v111 = vsel %vm109, %v57, 0
    %v114 = vsel %vm109, %v58, 0
    %v117 = vsel %vm109, %v59, 0
    %v120 = vsel %vm109, %v60, 0
    %v123 = vsel %vm109, %v61, 0
    %v126 = vsel %vm109, %v62, 0
    %v129 = vsel %vm109, %v63, 0
    %v132 = vsel %vm109, %v64, 0
    %v135 = vsel %vm109, %v65, 0
    %v138 = vsel %vm109, %v66, 0
    %v141 = vsel %vm109, %v67, 0
    %v144 = vsel %vm109, %v68, 0
    %v147 = vsel %vm109, %v69, 0
    %v150 = vsel %vm109, %v70, 0
    %v153 = vsel %vm109, %v71, 0
    %v156 = vsel %vm109, %v72, 0
    %158 = vmatpush.bf16.msra.mxu0 0
    %159 = vmatpush.bf16.msra.mxu0 0
    %160 = vmatpush.bf16.msra.mxu0 0
    %161 = vmatpush.bf16.msra.mxu0 0
    %162 = vmatpush.bf16.msra.mxu0 %v104
    %163 = vmatpush.bf16.msra.mxu0 %v103
    %164 = vmatpush.bf16.msra.mxu0 %v102
    %165 = vmatpush.bf16.msra.mxu0 %v101
    %166 = vmatmul.bf16.gmra.mxu0 %v111
    %v167 = vpop.f32.mrf.mxu0
    %v168 = vadd.f32 %v83, %v167
    %v169 = vpop.f32.mrf.mxu0
    %v170 = vadd.f32 %v83, %v169
    %171 = vmatmul.bf16.gmra.mxu0 %v114
    %v172 = vpop.f32.mrf.mxu0
    %v173 = vadd.f32 %v83, %v172
    %v174 = vpop.f32.mrf.mxu0
    %v175 = vadd.f32 %v83, %v174
    %176 = vmatmul.bf16.gmra.mxu0 %v117
    %v177 = vpop.f32.mrf.mxu0
    %v178 = vadd.f32 %v83, %v177
    %v179 = vpop.f32.mrf.mxu0
    %v180 = vadd.f32 %v83, %v179
    %181 = vmatmul.bf16.gmra.mxu0 %v120
    %v182 = vpop.f32.mrf.mxu0
    %v183 = vadd.f32 %v83, %v182
    %v184 = vpop.f32.mrf.mxu0
    %v185 = vadd.f32 %v83, %v184
    %186 = vmatmul.bf16.gmra.mxu0 %v123
    %v187 = vpop.f32.mrf.mxu0
    %v188 = vadd.f32 %v83, %v187
    %v189 = vpop.f32.mrf.mxu0
    %v190 = vadd.f32 %v83, %v189
    %191 = vmatmul.bf16.gmra.mxu0 %v126
    %v192 = vpop.f32.mrf.mxu0
    %v193 = vadd.f32 %v83, %v192
    %v194 = vpop.f32.mrf.mxu0
    %v195 = vadd.f32 %v83, %v194
    %196 = vmatmul.bf16.gmra.mxu0 %v129
    %v197 = vpop.f32.mrf.mxu0
    %v198 = vadd.f32 %v83, %v197
    %v199 = vpop.f32.mrf.mxu0
    %v200 = vadd.f32 %v83, %v199
    %201 = vmatmul.bf16.gmra.mxu0 %v132
    %v202 = vpop.f32.mrf.mxu0
    %v203 = vadd.f32 %v83, %v202
    %v204 = vpop.f32.mrf.mxu0
    %v205 = vadd.f32 %v83, %v204
    %206 = vmatmul.bf16.gmra.mxu0 %v135
    %v207 = vpop.f32.mrf.mxu0
    %v208 = vadd.f32 %v83, %v207
    %v209 = vpop.f32.mrf.mxu0
    %v210 = vadd.f32 %v83, %v209
    %211 = vmatmul.bf16.gmra.mxu0 %v138
    %v212 = vpop.f32.mrf.mxu0
    %v213 = vadd.f32 %v83, %v212
    %v214 = vpop.f32.mrf.mxu0
    %v215 = vadd.f32 %v83, %v214
    %216 = vmatmul.bf16.gmra.mxu0 %v141
    %v217 = vpop.f32.mrf.mxu0
    %v218 = vadd.f32 %v83, %v217
    %v219 = vpop.f32.mrf.mxu0
    %v220 = vadd.f32 %v83, %v219
    %221 = vmatmul.bf16.gmra.mxu0 %v144
    %v222 = vpop.f32.mrf.mxu0
    %v223 = vadd.f32 %v83, %v222
    %v224 = vpop.f32.mrf.mxu0
    %v225 = vadd.f32 %v83, %v224
    %226 = vmatmul.bf16.gmra.mxu0 %v147
    %v227 = vpop.f32.mrf.mxu0
    %v228 = vadd.f32 %v83, %v227
    %v229 = vpop.f32.mrf.mxu0
    %v230 = vadd.f32 %v83, %v229
    %231 = vmatmul.bf16.gmra.mxu0 %v150
    %v232 = vpop.f32.mrf.mxu0
    %v233 = vadd.f32 %v83, %v232
    %v234 = vpop.f32.mrf.mxu0
    %v235 = vadd.f32 %v83, %v234
    %236 = vmatmul.bf16.gmra.mxu0 %v153
    %v237 = vpop.f32.mrf.mxu0
    %v238 = vadd.f32 %v83, %v237
    %v239 = vpop.f32.mrf.mxu0
    %v240 = vadd.f32 %v83, %v239
    %241 = vmatmul.bf16.gmra.mxu0 %v156
    %v242 = vpop.f32.mrf.mxu0
    %v243 = vadd.f32 %v83, %v242
    %v244 = vpop.f32.mrf.mxu0
    %v245 = vadd.f32 %v83, %v244
    %246 = vdwg.mxu0
    %v247 = vmax.f32 %v168, 0.0
    %v248 = vmax.f32 %v170, 0.0
    %v249 = vmax.f32 %v173, 0.0
    %v250 = vmax.f32 %v175, 0.0
    %v251 = vmax.f32 %v178, 0.0
    %v252 = vmax.f32 %v180, 0.0
    %v253 = vmax.f32 %v183, 0.0
    %v254 = vmax.f32 %v185, 0.0
    %v255 = vmax.f32 %v188, 0.0
    %v256 = vmax.f32 %v190, 0.0
    %v257 = vmax.f32 %v193, 0.0
    %v258 = vmax.f32 %v195, 0.0
    %v259 = vmax.f32 %v198, 0.0
    %v260 = vmax.f32 %v200, 0.0
    %v261 = vmax.f32 %v203, 0.0
    %v262 = vmax.f32 %v205, 0.0
    %v263 = vmax.f32 %v208, 0.0
    %v264 = vmax.f32 %v210, 0.0
    %v265 = vmax.f32 %v213, 0.0
    %v266 = vmax.f32 %v215, 0.0
    %v267 = vmax.f32 %v218, 0.0
    %v268 = vmax.f32 %v220, 0.0
    %v269 = vmax.f32 %v223, 0.0
    %v270 = vmax.f32 %v225, 0.0
    %v271 = vmax.f32 %v228, 0.0
    %v272 = vmax.f32 %v230, 0.0
    %v273 = vmax.f32 %v233, 0.0
    %v274 = vmax.f32 %v235, 0.0
    %v275 = vmax.f32 %v238, 0.0
    %v276 = vmax.f32 %v240, 0.0
    %v277 = vmax.f32 %v243, 0.0
    %v278 = vmax.f32 %v245, 0.0
    %v279 = vpack.c.bf16 %v248, %v247
    %v280 = vpack.c.bf16 %v250, %v249
    %v281 = vpack.c.bf16 %v252, %v251
    %v282 = vpack.c.bf16 %v254, %v253
    %v283 = vpack.c.bf16 %v256, %v255
    %v284 = vpack.c.bf16 %v258, %v257
    %v285 = vpack.c.bf16 %v260, %v259
    %v286 = vpack.c.bf16 %v262, %v261
    %v287 = vpack.c.bf16 %v264, %v263
    %v288 = vpack.c.bf16 %v266, %v265
    %v289 = vpack.c.bf16 %v268, %v267
    %v290 = vpack.c.bf16 %v270, %v269
    %v291 = vpack.c.bf16 %v272, %v271
    %v292 = vpack.c.bf16 %v274, %v273
    %v293 = vpack.c.bf16 %v276, %v275
    %v294 = vpack.c.bf16 %v278, %v277
    %s295 = scalar_lea.vmem %s1, 32
    %v296 = vld [vmem:[%s295] sm:$0xf]
    %v297 = vld [vmem:[%s295 + $0x4] sm:$0xf]
    %v298 = vld [vmem:[%s295 + $0x8] sm:$0xf]
    %v299 = vld [vmem:[%s295 + $0xc] sm:$0xf]
    %v300 = vld [vmem:[%s295 + $0x10] sm:$0xf]
    %v301 = vld [vmem:[%s295 + $0x14] sm:$0xf]
    %v302 = vld [vmem:[%s295 + $0x18] sm:$0xf]
    %v303 = vld [vmem:[%s295 + $0x1c] sm:$0xf]
    %s304 = scalar_lea.vmem %s2, 1
    %v305 = vld [vmem:[%s304] sm:$0x1]
    %v307 = vperm.slane %v305, 0
    %v317 = vunpack.c.l.b16 %v296
    %v318 = vunpack.c.l.b16 %v297
    %v319 = vunpack.c.l.b16 %v298
    %v320 = vunpack.c.l.b16 %v299
    %v321 = vunpack.c.l.b16 %v300
    %v322 = vunpack.c.l.b16 %v301
    %v323 = vunpack.c.l.b16 %v302
    %v324 = vunpack.c.l.b16 %v303
    %v325 = vpack.c.b16 %v318, %v317
    %v326 = vpack.c.b16 %v320, %v319
    %v327 = vpack.c.b16 %v322, %v321
    %v328 = vpack.c.b16 %v324, %v323
    %v334 = vsel %vm109, %v279, 0
    %v337 = vsel %vm109, %v280, 0
    %v340 = vsel %vm109, %v281, 0
    %v343 = vsel %vm109, %v282, 0
    %v346 = vsel %vm109, %v283, 0
    %v349 = vsel %vm109, %v284, 0
    %v352 = vsel %vm109, %v285, 0
    %v355 = vsel %vm109, %v286, 0
    %v358 = vsel %vm109, %v287, 0
    %v361 = vsel %vm109, %v288, 0
    %v364 = vsel %vm109, %v289, 0
    %v367 = vsel %vm109, %v290, 0
    %v370 = vsel %vm109, %v291, 0
    %v373 = vsel %vm109, %v292, 0
    %v376 = vsel %vm109, %v293, 0
    %v379 = vsel %vm109, %v294, 0
    %381 = vmatpush.bf16.msra.mxu0 0
    %382 = vmatpush.bf16.msra.mxu0 0
    %383 = vmatpush.bf16.msra.mxu0 0
    %384 = vmatpush.bf16.msra.mxu0 0
    %385 = vmatpush.bf16.msra.mxu0 %v328
    %386 = vmatpush.bf16.msra.mxu0 %v327
    %387 = vmatpush.bf16.msra.mxu0 %v326
    %388 = vmatpush.bf16.msra.mxu0 %v325
    %389 = vmatmul.bf16.gmra.mxu0 %v334
    %v390 = vpop.f32.mrf.mxu0
    %v391 = vadd.f32 %v307, %v390
    %v392 = vpop.f32.mrf.mxu0
    %v393 = vadd.f32 %v307, %v392
    %394 = vmatmul.bf16.gmra.mxu0 %v337
    %v395 = vpop.f32.mrf.mxu0
    %v396 = vadd.f32 %v307, %v395
    %v397 = vpop.f32.mrf.mxu0
    %v398 = vadd.f32 %v307, %v397
    %399 = vmatmul.bf16.gmra.mxu0 %v340
    %v400 = vpop.f32.mrf.mxu0
    %v401 = vadd.f32 %v307, %v400
    %v402 = vpop.f32.mrf.mxu0
    %v403 = vadd.f32 %v307, %v402
    %404 = vmatmul.bf16.gmra.mxu0 %v343
    %v405 = vpop.f32.mrf.mxu0
    %v406 = vadd.f32 %v307, %v405
    %v407 = vpop.f32.mrf.mxu0
    %v408 = vadd.f32 %v307, %v407
    %409 = vmatmul.bf16.gmra.mxu0 %v346
    %v410 = vpop.f32.mrf.mxu0
    %v411 = vadd.f32 %v307, %v410
    %v412 = vpop.f32.mrf.mxu0
    %v413 = vadd.f32 %v307, %v412
    %414 = vmatmul.bf16.gmra.mxu0 %v349
    %v415 = vpop.f32.mrf.mxu0
    %v416 = vadd.f32 %v307, %v415
    %v417 = vpop.f32.mrf.mxu0
    %v418 = vadd.f32 %v307, %v417
    %419 = vmatmul.bf16.gmra.mxu0 %v352
    %v420 = vpop.f32.mrf.mxu0
    %v421 = vadd.f32 %v307, %v420
    %v422 = vpop.f32.mrf.mxu0
    %v423 = vadd.f32 %v307, %v422
    %424 = vmatmul.bf16.gmra.mxu0 %v355
    %v425 = vpop.f32.mrf.mxu0
    %v426 = vadd.f32 %v307, %v425
    %v427 = vpop.f32.mrf.mxu0
    %v428 = vadd.f32 %v307, %v427
    %429 = vmatmul.bf16.gmra.mxu0 %v358
    %v430 = vpop.f32.mrf.mxu0
    %v431 = vadd.f32 %v307, %v430
    %v432 = vpop.f32.mrf.mxu0
    %v433 = vadd.f32 %v307, %v432
    %434 = vmatmul.bf16.gmra.mxu0 %v361
    %v435 = vpop.f32.mrf.mxu0
    %v436 = vadd.f32 %v307, %v435
    %v437 = vpop.f32.mrf.mxu0
    %v438 = vadd.f32 %v307, %v437
    %439 = vmatmul.bf16.gmra.mxu0 %v364
    %v440 = vpop.f32.mrf.mxu0
    %v441 = vadd.f32 %v307, %v440
    %v442 = vpop.f32.mrf.mxu0
    %v443 = vadd.f32 %v307, %v442
    %444 = vmatmul.bf16.gmra.mxu0 %v367
    %v445 = vpop.f32.mrf.mxu0
    %v446 = vadd.f32 %v307, %v445
    %v447 = vpop.f32.mrf.mxu0
    %v448 = vadd.f32 %v307, %v447
    %449 = vmatmul.bf16.gmra.mxu0 %v370
    %v450 = vpop.f32.mrf.mxu0
    %v451 = vadd.f32 %v307, %v450
    %v452 = vpop.f32.mrf.mxu0
    %v453 = vadd.f32 %v307, %v452
    %454 = vmatmul.bf16.gmra.mxu0 %v373
    %v455 = vpop.f32.mrf.mxu0
    %v456 = vadd.f32 %v307, %v455
    %v457 = vpop.f32.mrf.mxu0
    %v458 = vadd.f32 %v307, %v457
    %459 = vmatmul.bf16.gmra.mxu0 %v376
    %v460 = vpop.f32.mrf.mxu0
    %v461 = vadd.f32 %v307, %v460
    %v462 = vpop.f32.mrf.mxu0
    %v463 = vadd.f32 %v307, %v462
    %464 = vmatmul.bf16.gmra.mxu0 %v379
    %v465 = vpop.f32.mrf.mxu0
    %v466 = vadd.f32 %v307, %v465
    %v467 = vpop.f32.mrf.mxu0
    %v468 = vadd.f32 %v307, %v467
    %469 = vdwg.mxu0
    %v470 = vmax.f32 %v391, 0.0
    %v471 = vmax.f32 %v393, 0.0
    %v472 = vmax.f32 %v396, 0.0
    %v473 = vmax.f32 %v398, 0.0
    %v474 = vmax.f32 %v401, 0.0
    %v475 = vmax.f32 %v403, 0.0
    %v476 = vmax.f32 %v406, 0.0
    %v477 = vmax.f32 %v408, 0.0
    %v478 = vmax.f32 %v411, 0.0
    %v479 = vmax.f32 %v413, 0.0
    %v480 = vmax.f32 %v416, 0.0
    %v481 = vmax.f32 %v418, 0.0
    %v482 = vmax.f32 %v421, 0.0
    %v483 = vmax.f32 %v423, 0.0
    %v484 = vmax.f32 %v426, 0.0
    %v485 = vmax.f32 %v428, 0.0
    %v486 = vmax.f32 %v431, 0.0
    %v487 = vmax.f32 %v433, 0.0
    %v488 = vmax.f32 %v436, 0.0
    %v489 = vmax.f32 %v438, 0.0
    %v490 = vmax.f32 %v441, 0.0
    %v491 = vmax.f32 %v443, 0.0
    %v492 = vmax.f32 %v446, 0.0
    %v493 = vmax.f32 %v448, 0.0
    %v494 = vmax.f32 %v451, 0.0
    %v495 = vmax.f32 %v453, 0.0
    %v496 = vmax.f32 %v456, 0.0
    %v497 = vmax.f32 %v458, 0.0
    %v498 = vmax.f32 %v461, 0.0
    %v499 = vmax.f32 %v463, 0.0
    %v500 = vmax.f32 %v466, 0.0
    %v501 = vmax.f32 %v468, 0.0
    %v502 = vpack.c.bf16 %v471, %v470
    %v503 = vpack.c.bf16 %v473, %v472
    %v504 = vpack.c.bf16 %v475, %v474
    %v505 = vpack.c.bf16 %v477, %v476
    %v506 = vpack.c.bf16 %v479, %v478
    %v507 = vpack.c.bf16 %v481, %v480
    %v508 = vpack.c.bf16 %v483, %v482
    %v509 = vpack.c.bf16 %v485, %v484
    %v510 = vpack.c.bf16 %v487, %v486
    %v511 = vpack.c.bf16 %v489, %v488
    %v512 = vpack.c.bf16 %v491, %v490
    %v513 = vpack.c.bf16 %v493, %v492
    %v514 = vpack.c.bf16 %v495, %v494
    %v515 = vpack.c.bf16 %v497, %v496
    %v516 = vpack.c.bf16 %v499, %v498
    %v517 = vpack.c.bf16 %v501, %v500
    %s518 = scalar_lea.vmem %s1, 64
    %v519 = vld [vmem:[%s518] sm:$0xf]
    %v520 = vld [vmem:[%s518 + $0x4] sm:$0xf]
    %v521 = vld [vmem:[%s518 + $0x8] sm:$0xf]
    %v522 = vld [vmem:[%s518 + $0xc] sm:$0xf]
    %v523 = vld [vmem:[%s518 + $0x10] sm:$0xf]
    %v524 = vld [vmem:[%s518 + $0x14] sm:$0xf]
    %v525 = vld [vmem:[%s518 + $0x18] sm:$0xf]
    %v526 = vld [vmem:[%s518 + $0x1c] sm:$0xf]
    %s527 = scalar_lea.vmem %s2, 2
    %v528 = vld [vmem:[%s527] sm:$0x1]
    %v530 = vperm.slane %v528, 0
    %v540 = vunpack.c.l.b16 %v519
    %v541 = vunpack.c.l.b16 %v520
    %v542 = vunpack.c.l.b16 %v521
    %v543 = vunpack.c.l.b16 %v522
    %v544 = vunpack.c.l.b16 %v523
    %v545 = vunpack.c.l.b16 %v524
    %v546 = vunpack.c.l.b16 %v525
    %v547 = vunpack.c.l.b16 %v526
    %v548 = vpack.c.b16 %v541, %v540
    %v549 = vpack.c.b16 %v543, %v542
    %v550 = vpack.c.b16 %v545, %v544
    %v551 = vpack.c.b16 %v547, %v546
    %v557 = vsel %vm109, %v502, 0
    %v560 = vsel %vm109, %v503, 0
    %v563 = vsel %vm109, %v504, 0
    %v566 = vsel %vm109, %v505, 0
    %v569 = vsel %vm109, %v506, 0
    %v572 = vsel %vm109, %v507, 0
    %v575 = vsel %vm109, %v508, 0
    %v578 = vsel %vm109, %v509, 0
    %v581 = vsel %vm109, %v510, 0
    %v584 = vsel %vm109, %v511, 0
    %v587 = vsel %vm109, %v512, 0
    %v590 = vsel %vm109, %v513, 0
    %v593 = vsel %vm109, %v514, 0
    %v596 = vsel %vm109, %v515, 0
    %v599 = vsel %vm109, %v516, 0
    %v602 = vsel %vm109, %v517, 0
    %604 = vmatpush.bf16.msra.mxu0 0
    %605 = vmatpush.bf16.msra.mxu0 0
    %606 = vmatpush.bf16.msra.mxu0 0
    %607 = vmatpush.bf16.msra.mxu0 0
    %608 = vmatpush.bf16.msra.mxu0 %v551
    %609 = vmatpush.bf16.msra.mxu0 %v550
    %610 = vmatpush.bf16.msra.mxu0 %v549
    %611 = vmatpush.bf16.msra.mxu0 %v548
    %612 = vmatmul.bf16.gmra.mxu0 %v557
    %v613 = vpop.f32.mrf.mxu0
    %v614 = vadd.f32 %v530, %v613
    %v615 = vpop.f32.mrf.mxu0
    %v616 = vadd.f32 %v530, %v615
    %617 = vmatmul.bf16.gmra.mxu0 %v560
    %v618 = vpop.f32.mrf.mxu0
    %v619 = vadd.f32 %v530, %v618
    %v620 = vpop.f32.mrf.mxu0
    %v621 = vadd.f32 %v530, %v620
    %622 = vmatmul.bf16.gmra.mxu0 %v563
    %v623 = vpop.f32.mrf.mxu0
    %v624 = vadd.f32 %v530, %v623
    %v625 = vpop.f32.mrf.mxu0
    %v626 = vadd.f32 %v530, %v625
    %627 = vmatmul.bf16.gmra.mxu0 %v566
    %v628 = vpop.f32.mrf.mxu0
    %v629 = vadd.f32 %v530, %v628
    %v630 = vpop.f32.mrf.mxu0
    %v631 = vadd.f32 %v530, %v630
    %632 = vmatmul.bf16.gmra.mxu0 %v569
    %v633 = vpop.f32.mrf.mxu0
    %v634 = vadd.f32 %v530, %v633
    %v635 = vpop.f32.mrf.mxu0
    %v636 = vadd.f32 %v530, %v635
    %637 = vmatmul.bf16.gmra.mxu0 %v572
    %v638 = vpop.f32.mrf.mxu0
    %v639 = vadd.f32 %v530, %v638
    %v640 = vpop.f32.mrf.mxu0
    %v641 = vadd.f32 %v530, %v640
    %642 = vmatmul.bf16.gmra.mxu0 %v575
    %v643 = vpop.f32.mrf.mxu0
    %v644 = vadd.f32 %v530, %v643
    %v645 = vpop.f32.mrf.mxu0
    %v646 = vadd.f32 %v530, %v645
    %647 = vmatmul.bf16.gmra.mxu0 %v578
    %v648 = vpop.f32.mrf.mxu0
    %v649 = vadd.f32 %v530, %v648
    %v650 = vpop.f32.mrf.mxu0
    %v651 = vadd.f32 %v530, %v650
    %652 = vmatmul.bf16.gmra.mxu0 %v581
    %v653 = vpop.f32.mrf.mxu0
    %v654 = vadd.f32 %v530, %v653
    %v655 = vpop.f32.mrf.mxu0
    %v656 = vadd.f32 %v530, %v655
    %657 = vmatmul.bf16.gmra.mxu0 %v584
    %v658 = vpop.f32.mrf.mxu0
    %v659 = vadd.f32 %v530, %v658
    %v660 = vpop.f32.mrf.mxu0
    %v661 = vadd.f32 %v530, %v660
    %662 = vmatmul.bf16.gmra.mxu0 %v587
    %v663 = vpop.f32.mrf.mxu0
    %v664 = vadd.f32 %v530, %v663
    %v665 = vpop.f32.mrf.mxu0
    %v666 = vadd.f32 %v530, %v665
    %667 = vmatmul.bf16.gmra.mxu0 %v590
    %v668 = vpop.f32.mrf.mxu0
    %v669 = vadd.f32 %v530, %v668
    %v670 = vpop.f32.mrf.mxu0
    %v671 = vadd.f32 %v530, %v670
    %672 = vmatmul.bf16.gmra.mxu0 %v593
    %v673 = vpop.f32.mrf.mxu0
    %v674 = vadd.f32 %v530, %v673
    %v675 = vpop.f32.mrf.mxu0
    %v676 = vadd.f32 %v530, %v675
    %677 = vmatmul.bf16.gmra.mxu0 %v596
    %v678 = vpop.f32.mrf.mxu0
    %v679 = vadd.f32 %v530, %v678
    %v680 = vpop.f32.mrf.mxu0
    %v681 = vadd.f32 %v530, %v680
    %682 = vmatmul.bf16.gmra.mxu0 %v599
    %v683 = vpop.f32.mrf.mxu0
    %v684 = vadd.f32 %v530, %v683
    %v685 = vpop.f32.mrf.mxu0
    %v686 = vadd.f32 %v530, %v685
    %687 = vmatmul.bf16.gmra.mxu0 %v602
    %v688 = vpop.f32.mrf.mxu0
    %v689 = vadd.f32 %v530, %v688
    %v690 = vpop.f32.mrf.mxu0
    %v691 = vadd.f32 %v530, %v690
    %692 = vdwg.mxu0
    %v693 = vmax.f32 %v614, 0.0
    %v694 = vmax.f32 %v616, 0.0
    %v695 = vmax.f32 %v619, 0.0
    %v696 = vmax.f32 %v621, 0.0
    %v697 = vmax.f32 %v624, 0.0
    %v698 = vmax.f32 %v626, 0.0
    %v699 = vmax.f32 %v629, 0.0
    %v700 = vmax.f32 %v631, 0.0
    %v701 = vmax.f32 %v634, 0.0
    %v702 = vmax.f32 %v636, 0.0
    %v703 = vmax.f32 %v639, 0.0
    %v704 = vmax.f32 %v641, 0.0
    %v705 = vmax.f32 %v644, 0.0
    %v706 = vmax.f32 %v646, 0.0
    %v707 = vmax.f32 %v649, 0.0
    %v708 = vmax.f32 %v651, 0.0
    %v709 = vmax.f32 %v654, 0.0
    %v710 = vmax.f32 %v656, 0.0
    %v711 = vmax.f32 %v659, 0.0
    %v712 = vmax.f32 %v661, 0.0
    %v713 = vmax.f32 %v664, 0.0
    %v714 = vmax.f32 %v666, 0.0
    %v715 = vmax.f32 %v669, 0.0
    %v716 = vmax.f32 %v671, 0.0
    %v717 = vmax.f32 %v674, 0.0
    %v718 = vmax.f32 %v676, 0.0
    %v719 = vmax.f32 %v679, 0.0
    %v720 = vmax.f32 %v681, 0.0
    %v721 = vmax.f32 %v684, 0.0
    %v722 = vmax.f32 %v686, 0.0
    %v723 = vmax.f32 %v689, 0.0
    %v724 = vmax.f32 %v691, 0.0
    %v725 = vpack.c.bf16 %v694, %v693
    %v726 = vpack.c.bf16 %v696, %v695
    %v727 = vpack.c.bf16 %v698, %v697
    %v728 = vpack.c.bf16 %v700, %v699
    %v729 = vpack.c.bf16 %v702, %v701
    %v730 = vpack.c.bf16 %v704, %v703
    %v731 = vpack.c.bf16 %v706, %v705
    %v732 = vpack.c.bf16 %v708, %v707
    %v733 = vpack.c.bf16 %v710, %v709
    %v734 = vpack.c.bf16 %v712, %v711
    %v735 = vpack.c.bf16 %v714, %v713
    %v736 = vpack.c.bf16 %v716, %v715
    %v737 = vpack.c.bf16 %v718, %v717
    %v738 = vpack.c.bf16 %v720, %v719
    %v739 = vpack.c.bf16 %v722, %v721
    %v740 = vpack.c.bf16 %v724, %v723
    %s741 = scalar_lea.vmem %s1, 96
    %v742 = vld [vmem:[%s741] sm:$0xf]
    %v743 = vld [vmem:[%s741 + $0x4] sm:$0xf]
    %v744 = vld [vmem:[%s741 + $0x8] sm:$0xf]
    %v745 = vld [vmem:[%s741 + $0xc] sm:$0xf]
    %v746 = vld [vmem:[%s741 + $0x10] sm:$0xf]
    %v747 = vld [vmem:[%s741 + $0x14] sm:$0xf]
    %v748 = vld [vmem:[%s741 + $0x18] sm:$0xf]
    %v749 = vld [vmem:[%s741 + $0x1c] sm:$0xf]
    %s750 = scalar_lea.vmem %s2, 3
    %v751 = vld [vmem:[%s750] sm:$0x1]
    %v753 = vperm.slane %v751, 0
    %v763 = vunpack.c.l.b16 %v742
    %v764 = vunpack.c.l.b16 %v743
    %v765 = vunpack.c.l.b16 %v744
    %v766 = vunpack.c.l.b16 %v745
    %v767 = vunpack.c.l.b16 %v746
    %v768 = vunpack.c.l.b16 %v747
    %v769 = vunpack.c.l.b16 %v748
    %v770 = vunpack.c.l.b16 %v749
    %v771 = vpack.c.b16 %v764, %v763
    %v772 = vpack.c.b16 %v766, %v765
    %v773 = vpack.c.b16 %v768, %v767
    %v774 = vpack.c.b16 %v770, %v769
    %v780 = vsel %vm109, %v725, 0
    %v783 = vsel %vm109, %v726, 0
    %v786 = vsel %vm109, %v727, 0
    %v789 = vsel %vm109, %v728, 0
    %v792 = vsel %vm109, %v729, 0
    %v795 = vsel %vm109, %v730, 0
    %v798 = vsel %vm109, %v731, 0
    %v801 = vsel %vm109, %v732, 0
    %v804 = vsel %vm109, %v733, 0
    %v807 = vsel %vm109, %v734, 0
    %v810 = vsel %vm109, %v735, 0
    %v813 = vsel %vm109, %v736, 0
    %v816 = vsel %vm109, %v737, 0
    %v819 = vsel %vm109, %v738, 0
    %v822 = vsel %vm109, %v739, 0
    %v825 = vsel %vm109, %v740, 0
    %827 = vmatpush.bf16.msra.mxu0 0
    %828 = vmatpush.bf16.msra.mxu0 0
    %829 = vmatpush.bf16.msra.mxu0 0
    %830 = vmatpush.bf16.msra.mxu0 0
    %831 = vmatpush.bf16.msra.mxu0 %v774
    %832 = vmatpush.bf16.msra.mxu0 %v773
    %833 = vmatpush.bf16.msra.mxu0 %v772
    %834 = vmatpush.bf16.msra.mxu0 %v771
    %835 = vmatmul.bf16.gmra.mxu0 %v780
    %v836 = vpop.f32.mrf.mxu0
    %v837 = vadd.f32 %v753, %v836
    %v838 = vpop.f32.mrf.mxu0
    %v839 = vadd.f32 %v753, %v838
    %840 = vmatmul.bf16.gmra.mxu0 %v783
    %v841 = vpop.f32.mrf.mxu0
    %v842 = vadd.f32 %v753, %v841
    %v843 = vpop.f32.mrf.mxu0
    %v844 = vadd.f32 %v753, %v843
    %845 = vmatmul.bf16.gmra.mxu0 %v786
    %v846 = vpop.f32.mrf.mxu0
    %v847 = vadd.f32 %v753, %v846
    %v848 = vpop.f32.mrf.mxu0
    %v849 = vadd.f32 %v753, %v848
    %850 = vmatmul.bf16.gmra.mxu0 %v789
    %v851 = vpop.f32.mrf.mxu0
    %v852 = vadd.f32 %v753, %v851
    %v853 = vpop.f32.mrf.mxu0
    %v854 = vadd.f32 %v753, %v853
    %855 = vmatmul.bf16.gmra.mxu0 %v792
    %v856 = vpop.f32.mrf.mxu0
    %v857 = vadd.f32 %v753, %v856
    %v858 = vpop.f32.mrf.mxu0
    %v859 = vadd.f32 %v753, %v858
    %860 = vmatmul.bf16.gmra.mxu0 %v795
    %v861 = vpop.f32.mrf.mxu0
    %v862 = vadd.f32 %v753, %v861
    %v863 = vpop.f32.mrf.mxu0
    %v864 = vadd.f32 %v753, %v863
    %865 = vmatmul.bf16.gmra.mxu0 %v798
    %v866 = vpop.f32.mrf.mxu0
    %v867 = vadd.f32 %v753, %v866
    %v868 = vpop.f32.mrf.mxu0
    %v869 = vadd.f32 %v753, %v868
    %870 = vmatmul.bf16.gmra.mxu0 %v801
    %v871 = vpop.f32.mrf.mxu0
    %v872 = vadd.f32 %v753, %v871
    %v873 = vpop.f32.mrf.mxu0
    %v874 = vadd.f32 %v753, %v873
    %875 = vmatmul.bf16.gmra.mxu0 %v804
    %v876 = vpop.f32.mrf.mxu0
    %v877 = vadd.f32 %v753, %v876
    %v878 = vpop.f32.mrf.mxu0
    %v879 = vadd.f32 %v753, %v878
    %880 = vmatmul.bf16.gmra.mxu0 %v807
    %v881 = vpop.f32.mrf.mxu0
    %v882 = vadd.f32 %v753, %v881
    %v883 = vpop.f32.mrf.mxu0
    %v884 = vadd.f32 %v753, %v883
    %885 = vmatmul.bf16.gmra.mxu0 %v810
    %v886 = vpop.f32.mrf.mxu0
    %v887 = vadd.f32 %v753, %v886
    %v888 = vpop.f32.mrf.mxu0
    %v889 = vadd.f32 %v753, %v888
    %890 = vmatmul.bf16.gmra.mxu0 %v813
    %v891 = vpop.f32.mrf.mxu0
    %v892 = vadd.f32 %v753, %v891
    %v893 = vpop.f32.mrf.mxu0
    %v894 = vadd.f32 %v753, %v893
    %895 = vmatmul.bf16.gmra.mxu0 %v816
    %v896 = vpop.f32.mrf.mxu0
    %v897 = vadd.f32 %v753, %v896
    %v898 = vpop.f32.mrf.mxu0
    %v899 = vadd.f32 %v753, %v898
    %900 = vmatmul.bf16.gmra.mxu0 %v819
    %v901 = vpop.f32.mrf.mxu0
    %v902 = vadd.f32 %v753, %v901
    %v903 = vpop.f32.mrf.mxu0
    %v904 = vadd.f32 %v753, %v903
    %905 = vmatmul.bf16.gmra.mxu0 %v822
    %v906 = vpop.f32.mrf.mxu0
    %v907 = vadd.f32 %v753, %v906
    %v908 = vpop.f32.mrf.mxu0
    %v909 = vadd.f32 %v753, %v908
    %910 = vmatmul.bf16.gmra.mxu0 %v825
    %v911 = vpop.f32.mrf.mxu0
    %v912 = vadd.f32 %v753, %v911
    %v913 = vpop.f32.mrf.mxu0
    %v914 = vadd.f32 %v753, %v913
    %915 = vdwg.mxu0
    %v916 = vmax.f32 %v837, 0.0
    %v917 = vmax.f32 %v839, 0.0
    %v918 = vmax.f32 %v842, 0.0
    %v919 = vmax.f32 %v844, 0.0
    %v920 = vmax.f32 %v847, 0.0
    %v921 = vmax.f32 %v849, 0.0
    %v922 = vmax.f32 %v852, 0.0
    %v923 = vmax.f32 %v854, 0.0
    %v924 = vmax.f32 %v857, 0.0
    %v925 = vmax.f32 %v859, 0.0
    %v926 = vmax.f32 %v862, 0.0
    %v927 = vmax.f32 %v864, 0.0
    %v928 = vmax.f32 %v867, 0.0
    %v929 = vmax.f32 %v869, 0.0
    %v930 = vmax.f32 %v872, 0.0
    %v931 = vmax.f32 %v874, 0.0
    %v932 = vmax.f32 %v877, 0.0
    %v933 = vmax.f32 %v879, 0.0
    %v934 = vmax.f32 %v882, 0.0
    %v935 = vmax.f32 %v884, 0.0
    %v936 = vmax.f32 %v887, 0.0
    %v937 = vmax.f32 %v889, 0.0
    %v938 = vmax.f32 %v892, 0.0
    %v939 = vmax.f32 %v894, 0.0
    %v940 = vmax.f32 %v897, 0.0
    %v941 = vmax.f32 %v899, 0.0
    %v942 = vmax.f32 %v902, 0.0
    %v943 = vmax.f32 %v904, 0.0
    %v944 = vmax.f32 %v907, 0.0
    %v945 = vmax.f32 %v909, 0.0
    %v946 = vmax.f32 %v912, 0.0
    %v947 = vmax.f32 %v914, 0.0
    %v948 = vsub.f32 %v25, %v916
    %v949 = vsub.f32 %v26, %v917
    %v950 = vsub.f32 %v27, %v918
    %v951 = vsub.f32 %v28, %v919
    %v952 = vsub.f32 %v29, %v920
    %v953 = vsub.f32 %v30, %v921
    %v954 = vsub.f32 %v31, %v922
    %v955 = vsub.f32 %v32, %v923
    %v956 = vsub.f32 %v33, %v924
    %v957 = vsub.f32 %v34, %v925
    %v958 = vsub.f32 %v35, %v926
    %v959 = vsub.f32 %v36, %v927
    %v960 = vsub.f32 %v37, %v928
    %v961 = vsub.f32 %v38, %v929
    %v962 = vsub.f32 %v39, %v930
    %v963 = vsub.f32 %v40, %v931
    %v964 = vsub.f32 %v41, %v932
    %v965 = vsub.f32 %v42, %v933
    %v966 = vsub.f32 %v43, %v934
    %v967 = vsub.f32 %v44, %v935
    %v968 = vsub.f32 %v45, %v936
    %v969 = vsub.f32 %v46, %v937
    %v970 = vsub.f32 %v47, %v938
    %v971 = vsub.f32 %v48, %v939
    %v972 = vsub.f32 %v49, %v940
    %v973 = vsub.f32 %v50, %v941
    %v974 = vsub.f32 %v51, %v942
    %v975 = vsub.f32 %v52, %v943
    %v976 = vsub.f32 %v53, %v944
    %v977 = vsub.f32 %v54, %v945
    %v978 = vsub.f32 %v55, %v946
    %v979 = vsub.f32 %v56, %v947
    %v980 = vpack.c.bf16 %v949, %v948
    %v981 = vpack.c.bf16 %v951, %v950
    %v982 = vpack.c.bf16 %v953, %v952
    %v983 = vpack.c.bf16 %v955, %v954
    %v984 = vpack.c.bf16 %v957, %v956
    %v985 = vpack.c.bf16 %v959, %v958
    %v986 = vpack.c.bf16 %v961, %v960
    %v987 = vpack.c.bf16 %v963, %v962
    %v988 = vpack.c.bf16 %v965, %v964
    %v989 = vpack.c.bf16 %v967, %v966
    %v990 = vpack.c.bf16 %v969, %v968
    %v991 = vpack.c.bf16 %v971, %v970
    %v992 = vpack.c.bf16 %v973, %v972
    %v993 = vpack.c.bf16 %v975, %v974
    %v994 = vpack.c.bf16 %v977, %v976
    %v995 = vpack.c.bf16 %v979, %v978
    %v996 = vld [vmem:[%s3] sm:$0xf]
    %v997 = vld [vmem:[%s3 + $0x4] sm:$0xf]
    %v998 = vld [vmem:[%s3 + $0x8] sm:$0xf]
    %v999 = vld [vmem:[%s3 + $0xc] sm:$0xf]
    %v1000 = vld [vmem:[%s3 + $0x10] sm:$0xf]
    %v1001 = vld [vmem:[%s3 + $0x14] sm:$0xf]
    %v1002 = vld [vmem:[%s3 + $0x18] sm:$0xf]
    %v1003 = vld [vmem:[%s3 + $0x1c] sm:$0xf]
    %v1004 = vld [vmem:[%s5] sm:$0x1]
    %v1006 = vperm.slane %v1004, 0
    %v1016 = vunpack.c.l.b16 %v996
    %v1017 = vunpack.c.l.b16 %v997
    %v1018 = vunpack.c.l.b16 %v998
    %v1019 = vunpack.c.l.b16 %v999
    %v1020 = vunpack.c.l.b16 %v1000
    %v1021 = vunpack.c.l.b16 %v1001
    %v1022 = vunpack.c.l.b16 %v1002
    %v1023 = vunpack.c.l.b16 %v1003
    %v1024 = vpack.c.b16 %v1017, %v1016
    %v1025 = vpack.c.b16 %v1019, %v1018
    %v1026 = vpack.c.b16 %v1021, %v1020
    %v1027 = vpack.c.b16 %v1023, %v1022
    %v1033 = vsel %vm109, %v980, 0
    %v1036 = vsel %vm109, %v981, 0
    %v1039 = vsel %vm109, %v982, 0
    %v1042 = vsel %vm109, %v983, 0
    %v1045 = vsel %vm109, %v984, 0
    %v1048 = vsel %vm109, %v985, 0
    %v1051 = vsel %vm109, %v986, 0
    %v1054 = vsel %vm109, %v987, 0
    %v1057 = vsel %vm109, %v988, 0
    %v1060 = vsel %vm109, %v989, 0
    %v1063 = vsel %vm109, %v990, 0
    %v1066 = vsel %vm109, %v991, 0
    %v1069 = vsel %vm109, %v992, 0
    %v1072 = vsel %vm109, %v993, 0
    %v1075 = vsel %vm109, %v994, 0
    %v1078 = vsel %vm109, %v995, 0
    %1080 = vmatpush.bf16.msra.mxu0 0
    %1081 = vmatpush.bf16.msra.mxu0 0
    %1082 = vmatpush.bf16.msra.mxu0 0
    %1083 = vmatpush.bf16.msra.mxu0 0
    %1084 = vmatpush.bf16.msra.mxu0 %v1027
    %1085 = vmatpush.bf16.msra.mxu0 %v1026
    %1086 = vmatpush.bf16.msra.mxu0 %v1025
    %1087 = vmatpush.bf16.msra.mxu0 %v1024
    %1088 = vmatmul.bf16.gmra.mxu0 %v1033
    %v1089 = vpop.f32.mrf.mxu0
    %v1090 = vadd.f32 %v1006, %v1089
    %v1091 = vpop.f32.mrf.mxu0
    %v1092 = vadd.f32 %v1006, %v1091
    %1093 = vmatmul.bf16.gmra.mxu0 %v1036
    %v1094 = vpop.f32.mrf.mxu0
    %v1095 = vadd.f32 %v1006, %v1094
    %v1096 = vpop.f32.mrf.mxu0
    %v1097 = vadd.f32 %v1006, %v1096
    %1098 = vmatmul.bf16.gmra.mxu0 %v1039
    %v1099 = vpop.f32.mrf.mxu0
    %v1100 = vadd.f32 %v1006, %v1099
    %v1101 = vpop.f32.mrf.mxu0
    %v1102 = vadd.f32 %v1006, %v1101
    %1103 = vmatmul.bf16.gmra.mxu0 %v1042
    %v1104 = vpop.f32.mrf.mxu0
    %v1105 = vadd.f32 %v1006, %v1104
    %v1106 = vpop.f32.mrf.mxu0
    %v1107 = vadd.f32 %v1006, %v1106
    %1108 = vmatmul.bf16.gmra.mxu0 %v1045
    %v1109 = vpop.f32.mrf.mxu0
    %v1110 = vadd.f32 %v1006, %v1109
    %v1111 = vpop.f32.mrf.mxu0
    %v1112 = vadd.f32 %v1006, %v1111
    %1113 = vmatmul.bf16.gmra.mxu0 %v1048
    %v1114 = vpop.f32.mrf.mxu0
    %v1115 = vadd.f32 %v1006, %v1114
    %v1116 = vpop.f32.mrf.mxu0
    %v1117 = vadd.f32 %v1006, %v1116
    %1118 = vmatmul.bf16.gmra.mxu0 %v1051
    %v1119 = vpop.f32.mrf.mxu0
    %v1120 = vadd.f32 %v1006, %v1119
    %v1121 = vpop.f32.mrf.mxu0
    %v1122 = vadd.f32 %v1006, %v1121
    %1123 = vmatmul.bf16.gmra.mxu0 %v1054
    %v1124 = vpop.f32.mrf.mxu0
    %v1125 = vadd.f32 %v1006, %v1124
    %v1126 = vpop.f32.mrf.mxu0
    %v1127 = vadd.f32 %v1006, %v1126
    %1128 = vmatmul.bf16.gmra.mxu0 %v1057
    %v1129 = vpop.f32.mrf.mxu0
    %v1130 = vadd.f32 %v1006, %v1129
    %v1131 = vpop.f32.mrf.mxu0
    %v1132 = vadd.f32 %v1006, %v1131
    %1133 = vmatmul.bf16.gmra.mxu0 %v1060
    %v1134 = vpop.f32.mrf.mxu0
    %v1135 = vadd.f32 %v1006, %v1134
    %v1136 = vpop.f32.mrf.mxu0
    %v1137 = vadd.f32 %v1006, %v1136
    %1138 = vmatmul.bf16.gmra.mxu0 %v1063
    %v1139 = vpop.f32.mrf.mxu0
    %v1140 = vadd.f32 %v1006, %v1139
    %v1141 = vpop.f32.mrf.mxu0
    %v1142 = vadd.f32 %v1006, %v1141
    %1143 = vmatmul.bf16.gmra.mxu0 %v1066
    %v1144 = vpop.f32.mrf.mxu0
    %v1145 = vadd.f32 %v1006, %v1144
    %v1146 = vpop.f32.mrf.mxu0
    %v1147 = vadd.f32 %v1006, %v1146
    %1148 = vmatmul.bf16.gmra.mxu0 %v1069
    %v1149 = vpop.f32.mrf.mxu0
    %v1150 = vadd.f32 %v1006, %v1149
    %v1151 = vpop.f32.mrf.mxu0
    %v1152 = vadd.f32 %v1006, %v1151
    %1153 = vmatmul.bf16.gmra.mxu0 %v1072
    %v1154 = vpop.f32.mrf.mxu0
    %v1155 = vadd.f32 %v1006, %v1154
    %v1156 = vpop.f32.mrf.mxu0
    %v1157 = vadd.f32 %v1006, %v1156
    %1158 = vmatmul.bf16.gmra.mxu0 %v1075
    %v1159 = vpop.f32.mrf.mxu0
    %v1160 = vadd.f32 %v1006, %v1159
    %v1161 = vpop.f32.mrf.mxu0
    %v1162 = vadd.f32 %v1006, %v1161
    %1163 = vmatmul.bf16.gmra.mxu0 %v1078
    %v1164 = vpop.f32.mrf.mxu0
    %v1165 = vadd.f32 %v1006, %v1164
    %v1166 = vpop.f32.mrf.mxu0
    %v1167 = vadd.f32 %v1006, %v1166
    %1168 = vdwg.mxu0
    %v1169 = vmax.f32 %v1090, 0.0
    %v1170 = vmax.f32 %v1092, 0.0
    %v1171 = vmax.f32 %v1095, 0.0
    %v1172 = vmax.f32 %v1097, 0.0
    %v1173 = vmax.f32 %v1100, 0.0
    %v1174 = vmax.f32 %v1102, 0.0
    %v1175 = vmax.f32 %v1105, 0.0
    %v1176 = vmax.f32 %v1107, 0.0
    %v1177 = vmax.f32 %v1110, 0.0
    %v1178 = vmax.f32 %v1112, 0.0
    %v1179 = vmax.f32 %v1115, 0.0
    %v1180 = vmax.f32 %v1117, 0.0
    %v1181 = vmax.f32 %v1120, 0.0
    %v1182 = vmax.f32 %v1122, 0.0
    %v1183 = vmax.f32 %v1125, 0.0
    %v1184 = vmax.f32 %v1127, 0.0
    %v1185 = vmax.f32 %v1130, 0.0
    %v1186 = vmax.f32 %v1132, 0.0
    %v1187 = vmax.f32 %v1135, 0.0
    %v1188 = vmax.f32 %v1137, 0.0
    %v1189 = vmax.f32 %v1140, 0.0
    %v1190 = vmax.f32 %v1142, 0.0
    %v1191 = vmax.f32 %v1145, 0.0
    %v1192 = vmax.f32 %v1147, 0.0
    %v1193 = vmax.f32 %v1150, 0.0
    %v1194 = vmax.f32 %v1152, 0.0
    %v1195 = vmax.f32 %v1155, 0.0
    %v1196 = vmax.f32 %v1157, 0.0
    %v1197 = vmax.f32 %v1160, 0.0
    %v1198 = vmax.f32 %v1162, 0.0
    %v1199 = vmax.f32 %v1165, 0.0
    %v1200 = vmax.f32 %v1167, 0.0
    %v1201 = vpack.c.bf16 %v1170, %v1169
    %v1202 = vpack.c.bf16 %v1172, %v1171
    %v1203 = vpack.c.bf16 %v1174, %v1173
    %v1204 = vpack.c.bf16 %v1176, %v1175
    %v1205 = vpack.c.bf16 %v1178, %v1177
    %v1206 = vpack.c.bf16 %v1180, %v1179
    %v1207 = vpack.c.bf16 %v1182, %v1181
    %v1208 = vpack.c.bf16 %v1184, %v1183
    %v1209 = vpack.c.bf16 %v1186, %v1185
    %v1210 = vpack.c.bf16 %v1188, %v1187
    %v1211 = vpack.c.bf16 %v1190, %v1189
    %v1212 = vpack.c.bf16 %v1192, %v1191
    %v1213 = vpack.c.bf16 %v1194, %v1193
    %v1214 = vpack.c.bf16 %v1196, %v1195
    %v1215 = vpack.c.bf16 %v1198, %v1197
    %v1216 = vpack.c.bf16 %v1200, %v1199
    %v1217 = vld [vmem:[%s4] sm:$0xf]
    %v1218 = vld [vmem:[%s4 + $0x4] sm:$0xf]
    %v1219 = vld [vmem:[%s4 + $0x8] sm:$0xf]
    %v1220 = vld [vmem:[%s4 + $0xc] sm:$0xf]
    %v1221 = vld [vmem:[%s4 + $0x10] sm:$0xf]
    %v1222 = vld [vmem:[%s4 + $0x14] sm:$0xf]
    %v1223 = vld [vmem:[%s4 + $0x18] sm:$0xf]
    %v1224 = vld [vmem:[%s4 + $0x1c] sm:$0xf]
    %v1225 = vld [vmem:[%s4 + $0x20] sm:$0xf]
    %v1226 = vld [vmem:[%s4 + $0x24] sm:$0xf]
    %v1227 = vld [vmem:[%s4 + $0x28] sm:$0xf]
    %v1228 = vld [vmem:[%s4 + $0x2c] sm:$0xf]
    %v1229 = vld [vmem:[%s4 + $0x30] sm:$0xf]
    %v1230 = vld [vmem:[%s4 + $0x34] sm:$0xf]
    %v1231 = vld [vmem:[%s4 + $0x38] sm:$0xf]
    %v1232 = vld [vmem:[%s4 + $0x3c] sm:$0xf]
    %s1233 = scalar_lea.vmem %s5, 1
    %v1234 = vld [vmem:[%s1233] sm:$0x1]
    %v1236 = vperm.slane %v1234, 0
    %v1254 = vunpack.c.l.b16 %v1217
    %v1255 = vunpack.c.l.b16 %v1218
    %v1256 = vunpack.c.l.b16 %v1219
    %v1257 = vunpack.c.l.b16 %v1220
    %v1258 = vunpack.c.l.b16 %v1221
    %v1259 = vunpack.c.l.b16 %v1222
    %v1260 = vunpack.c.l.b16 %v1223
    %v1261 = vunpack.c.l.b16 %v1224
    %v1262 = vunpack.c.l.b16 %v1225
    %v1263 = vunpack.c.l.b16 %v1226
    %v1264 = vunpack.c.l.b16 %v1227
    %v1265 = vunpack.c.l.b16 %v1228
    %v1266 = vunpack.c.l.b16 %v1229
    %v1267 = vunpack.c.l.b16 %v1230
    %v1268 = vunpack.c.l.b16 %v1231
    %v1269 = vunpack.c.l.b16 %v1232
    %v1270 = vpack.c.b16 %v1255, %v1254
    %v1271 = vpack.c.b16 %v1257, %v1256
    %v1272 = vpack.c.b16 %v1259, %v1258
    %v1273 = vpack.c.b16 %v1261, %v1260
    %v1274 = vpack.c.b16 %v1263, %v1262
    %v1275 = vpack.c.b16 %v1265, %v1264
    %v1276 = vpack.c.b16 %v1267, %v1266
    %v1277 = vpack.c.b16 %v1269, %v1268
    %1286 = vmatpush.bf16.msra.mxu0 %v1277
    %1287 = vmatpush.bf16.msra.mxu0 %v1276
    %1288 = vmatpush.bf16.msra.mxu0 %v1275
    %1289 = vmatpush.bf16.msra.mxu0 %v1274
    %1290 = vmatpush.bf16.msra.mxu0 %v1273
    %1291 = vmatpush.bf16.msra.mxu0 %v1272
    %1292 = vmatpush.bf16.msra.mxu0 %v1271
    %1293 = vmatpush.bf16.msra.mxu0 %v1270
    %1294 = vmatmul.bf16.gmra.mxu0 %v1201
    %v1295 = vpop.f32.mrf.mxu0
    %v1296 = vadd.f32 %v1236, %v1295
    %v1297 = vpop.f32.mrf.mxu0
    %v1298 = vadd.f32 %v1236, %v1297
    %1299 = vmatmul.bf16.gmra.mxu0 %v1202
    %v1300 = vpop.f32.mrf.mxu0
    %v1301 = vadd.f32 %v1236, %v1300
    %v1302 = vpop.f32.mrf.mxu0
    %v1303 = vadd.f32 %v1236, %v1302
    %1304 = vmatmul.bf16.gmra.mxu0 %v1203
    %v1305 = vpop.f32.mrf.mxu0
    %v1306 = vadd.f32 %v1236, %v1305
    %v1307 = vpop.f32.mrf.mxu0
    %v1308 = vadd.f32 %v1236, %v1307
    %1309 = vmatmul.bf16.gmra.mxu0 %v1204
    %v1310 = vpop.f32.mrf.mxu0
    %v1311 = vadd.f32 %v1236, %v1310
    %v1312 = vpop.f32.mrf.mxu0
    %v1313 = vadd.f32 %v1236, %v1312
    %1314 = vmatmul.bf16.gmra.mxu0 %v1205
    %v1315 = vpop.f32.mrf.mxu0
    %v1316 = vadd.f32 %v1236, %v1315
    %v1317 = vpop.f32.mrf.mxu0
    %v1318 = vadd.f32 %v1236, %v1317
    %1319 = vmatmul.bf16.gmra.mxu0 %v1206
    %v1320 = vpop.f32.mrf.mxu0
    %v1321 = vadd.f32 %v1236, %v1320
    %v1322 = vpop.f32.mrf.mxu0
    %v1323 = vadd.f32 %v1236, %v1322
    %1324 = vmatmul.bf16.gmra.mxu0 %v1207
    %v1325 = vpop.f32.mrf.mxu0
    %v1326 = vadd.f32 %v1236, %v1325
    %v1327 = vpop.f32.mrf.mxu0
    %v1328 = vadd.f32 %v1236, %v1327
    %1329 = vmatmul.bf16.gmra.mxu0 %v1208
    %v1330 = vpop.f32.mrf.mxu0
    %v1331 = vadd.f32 %v1236, %v1330
    %v1332 = vpop.f32.mrf.mxu0
    %v1333 = vadd.f32 %v1236, %v1332
    %1334 = vmatmul.bf16.gmra.mxu0 %v1209
    %v1335 = vpop.f32.mrf.mxu0
    %v1336 = vadd.f32 %v1236, %v1335
    %v1337 = vpop.f32.mrf.mxu0
    %v1338 = vadd.f32 %v1236, %v1337
    %1339 = vmatmul.bf16.gmra.mxu0 %v1210
    %v1340 = vpop.f32.mrf.mxu0
    %v1341 = vadd.f32 %v1236, %v1340
    %v1342 = vpop.f32.mrf.mxu0
    %v1343 = vadd.f32 %v1236, %v1342
    %1344 = vmatmul.bf16.gmra.mxu0 %v1211
    %v1345 = vpop.f32.mrf.mxu0
    %v1346 = vadd.f32 %v1236, %v1345
    %v1347 = vpop.f32.mrf.mxu0
    %v1348 = vadd.f32 %v1236, %v1347
    %1349 = vmatmul.bf16.gmra.mxu0 %v1212
    %v1350 = vpop.f32.mrf.mxu0
    %v1351 = vadd.f32 %v1236, %v1350
    %v1352 = vpop.f32.mrf.mxu0
    %v1353 = vadd.f32 %v1236, %v1352
    %1354 = vmatmul.bf16.gmra.mxu0 %v1213
    %v1355 = vpop.f32.mrf.mxu0
    %v1356 = vadd.f32 %v1236, %v1355
    %v1357 = vpop.f32.mrf.mxu0
    %v1358 = vadd.f32 %v1236, %v1357
    %1359 = vmatmul.bf16.gmra.mxu0 %v1214
    %v1360 = vpop.f32.mrf.mxu0
    %v1361 = vadd.f32 %v1236, %v1360
    %v1362 = vpop.f32.mrf.mxu0
    %v1363 = vadd.f32 %v1236, %v1362
    %1364 = vmatmul.bf16.gmra.mxu0 %v1215
    %v1365 = vpop.f32.mrf.mxu0
    %v1366 = vadd.f32 %v1236, %v1365
    %v1367 = vpop.f32.mrf.mxu0
    %v1368 = vadd.f32 %v1236, %v1367
    %1369 = vmatmul.bf16.gmra.mxu0 %v1216
    %v1370 = vpop.f32.mrf.mxu0
    %v1371 = vadd.f32 %v1236, %v1370
    %v1372 = vpop.f32.mrf.mxu0
    %v1373 = vadd.f32 %v1236, %v1372
    %1374 = vdwg.mxu0
    %v1375 = vmax.f32 %v1296, 0.0
    %v1376 = vmax.f32 %v1298, 0.0
    %v1377 = vmax.f32 %v1301, 0.0
    %v1378 = vmax.f32 %v1303, 0.0
    %v1379 = vmax.f32 %v1306, 0.0
    %v1380 = vmax.f32 %v1308, 0.0
    %v1381 = vmax.f32 %v1311, 0.0
    %v1382 = vmax.f32 %v1313, 0.0
    %v1383 = vmax.f32 %v1316, 0.0
    %v1384 = vmax.f32 %v1318, 0.0
    %v1385 = vmax.f32 %v1321, 0.0
    %v1386 = vmax.f32 %v1323, 0.0
    %v1387 = vmax.f32 %v1326, 0.0
    %v1388 = vmax.f32 %v1328, 0.0
    %v1389 = vmax.f32 %v1331, 0.0
    %v1390 = vmax.f32 %v1333, 0.0
    %v1391 = vmax.f32 %v1336, 0.0
    %v1392 = vmax.f32 %v1338, 0.0
    %v1393 = vmax.f32 %v1341, 0.0
    %v1394 = vmax.f32 %v1343, 0.0
    %v1395 = vmax.f32 %v1346, 0.0
    %v1396 = vmax.f32 %v1348, 0.0
    %v1397 = vmax.f32 %v1351, 0.0
    %v1398 = vmax.f32 %v1353, 0.0
    %v1399 = vmax.f32 %v1356, 0.0
    %v1400 = vmax.f32 %v1358, 0.0
    %v1401 = vmax.f32 %v1361, 0.0
    %v1402 = vmax.f32 %v1363, 0.0
    %v1403 = vmax.f32 %v1366, 0.0
    %v1404 = vmax.f32 %v1368, 0.0
    %v1405 = vmax.f32 %v1371, 0.0
    %v1406 = vmax.f32 %v1373, 0.0
    %v1407 = vpack.c.bf16 %v1376, %v1375
    %v1408 = vpack.c.bf16 %v1378, %v1377
    %v1409 = vpack.c.bf16 %v1380, %v1379
    %v1410 = vpack.c.bf16 %v1382, %v1381
    %v1411 = vpack.c.bf16 %v1384, %v1383
    %v1412 = vpack.c.bf16 %v1386, %v1385
    %v1413 = vpack.c.bf16 %v1388, %v1387
    %v1414 = vpack.c.bf16 %v1390, %v1389
    %v1415 = vpack.c.bf16 %v1392, %v1391
    %v1416 = vpack.c.bf16 %v1394, %v1393
    %v1417 = vpack.c.bf16 %v1396, %v1395
    %v1418 = vpack.c.bf16 %v1398, %v1397
    %v1419 = vpack.c.bf16 %v1400, %v1399
    %v1420 = vpack.c.bf16 %v1402, %v1401
    %v1421 = vpack.c.bf16 %v1404, %v1403
    %v1422 = vpack.c.bf16 %v1406, %v1405
    %s1423 = scalar_lea.vmem %s4, 64
    %v1424 = vld [vmem:[%s1423] sm:$0xf]
    %v1425 = vld [vmem:[%s1423 + $0x4] sm:$0xf]
    %v1426 = vld [vmem:[%s1423 + $0x8] sm:$0xf]
    %v1427 = vld [vmem:[%s1423 + $0xc] sm:$0xf]
    %v1428 = vld [vmem:[%s1423 + $0x10] sm:$0xf]
    %v1429 = vld [vmem:[%s1423 + $0x14] sm:$0xf]
    %v1430 = vld [vmem:[%s1423 + $0x18] sm:$0xf]
    %v1431 = vld [vmem:[%s1423 + $0x1c] sm:$0xf]
    %v1432 = vld [vmem:[%s1423 + $0x20] sm:$0xf]
    %v1433 = vld [vmem:[%s1423 + $0x24] sm:$0xf]
    %v1434 = vld [vmem:[%s1423 + $0x28] sm:$0xf]
    %v1435 = vld [vmem:[%s1423 + $0x2c] sm:$0xf]
    %v1436 = vld [vmem:[%s1423 + $0x30] sm:$0xf]
    %v1437 = vld [vmem:[%s1423 + $0x34] sm:$0xf]
    %v1438 = vld [vmem:[%s1423 + $0x38] sm:$0xf]
    %v1439 = vld [vmem:[%s1423 + $0x3c] sm:$0xf]
    %s1440 = scalar_lea.vmem %s5, 2
    %v1441 = vld [vmem:[%s1440] sm:$0x1]
    %v1443 = vperm.slane %v1441, 0
    %v1461 = vunpack.c.l.b16 %v1424
    %v1462 = vunpack.c.l.b16 %v1425
    %v1463 = vunpack.c.l.b16 %v1426
    %v1464 = vunpack.c.l.b16 %v1427
    %v1465 = vunpack.c.l.b16 %v1428
    %v1466 = vunpack.c.l.b16 %v1429
    %v1467 = vunpack.c.l.b16 %v1430
    %v1468 = vunpack.c.l.b16 %v1431
    %v1469 = vunpack.c.l.b16 %v1432
    %v1470 = vunpack.c.l.b16 %v1433
    %v1471 = vunpack.c.l.b16 %v1434
    %v1472 = vunpack.c.l.b16 %v1435
    %v1473 = vunpack.c.l.b16 %v1436
    %v1474 = vunpack.c.l.b16 %v1437
    %v1475 = vunpack.c.l.b16 %v1438
    %v1476 = vunpack.c.l.b16 %v1439
    %v1477 = vpack.c.b16 %v1462, %v1461
    %v1478 = vpack.c.b16 %v1464, %v1463
    %v1479 = vpack.c.b16 %v1466, %v1465
    %v1480 = vpack.c.b16 %v1468, %v1467
    %v1481 = vpack.c.b16 %v1470, %v1469
    %v1482 = vpack.c.b16 %v1472, %v1471
    %v1483 = vpack.c.b16 %v1474, %v1473
    %v1484 = vpack.c.b16 %v1476, %v1475
    %1493 = vmatpush.bf16.msra.mxu0 %v1484
    %1494 = vmatpush.bf16.msra.mxu0 %v1483
    %1495 = vmatpush.bf16.msra.mxu0 %v1482
    %1496 = vmatpush.bf16.msra.mxu0 %v1481
    %1497 = vmatpush.bf16.msra.mxu0 %v1480
    %1498 = vmatpush.bf16.msra.mxu0 %v1479
    %1499 = vmatpush.bf16.msra.mxu0 %v1478
    %1500 = vmatpush.bf16.msra.mxu0 %v1477
    %1501 = vmatmul.bf16.gmra.mxu0 %v1407
    %v1502 = vpop.f32.mrf.mxu0
    %v1503 = vadd.f32 %v1443, %v1502
    %v1504 = vpop.f32.mrf.mxu0
    %v1505 = vadd.f32 %v1443, %v1504
    %1506 = vmatmul.bf16.gmra.mxu0 %v1408
    %v1507 = vpop.f32.mrf.mxu0
    %v1508 = vadd.f32 %v1443, %v1507
    %v1509 = vpop.f32.mrf.mxu0
    %v1510 = vadd.f32 %v1443, %v1509
    %1511 = vmatmul.bf16.gmra.mxu0 %v1409
    %v1512 = vpop.f32.mrf.mxu0
    %v1513 = vadd.f32 %v1443, %v1512
    %v1514 = vpop.f32.mrf.mxu0
    %v1515 = vadd.f32 %v1443, %v1514
    %1516 = vmatmul.bf16.gmra.mxu0 %v1410
    %v1517 = vpop.f32.mrf.mxu0
    %v1518 = vadd.f32 %v1443, %v1517
    %v1519 = vpop.f32.mrf.mxu0
    %v1520 = vadd.f32 %v1443, %v1519
    %1521 = vmatmul.bf16.gmra.mxu0 %v1411
    %v1522 = vpop.f32.mrf.mxu0
    %v1523 = vadd.f32 %v1443, %v1522
    %v1524 = vpop.f32.mrf.mxu0
    %v1525 = vadd.f32 %v1443, %v1524
    %1526 = vmatmul.bf16.gmra.mxu0 %v1412
    %v1527 = vpop.f32.mrf.mxu0
    %v1528 = vadd.f32 %v1443, %v1527
    %v1529 = vpop.f32.mrf.mxu0
    %v1530 = vadd.f32 %v1443, %v1529
    %1531 = vmatmul.bf16.gmra.mxu0 %v1413
    %v1532 = vpop.f32.mrf.mxu0
    %v1533 = vadd.f32 %v1443, %v1532
    %v1534 = vpop.f32.mrf.mxu0
    %v1535 = vadd.f32 %v1443, %v1534
    %1536 = vmatmul.bf16.gmra.mxu0 %v1414
    %v1537 = vpop.f32.mrf.mxu0
    %v1538 = vadd.f32 %v1443, %v1537
    %v1539 = vpop.f32.mrf.mxu0
    %v1540 = vadd.f32 %v1443, %v1539
    %1541 = vmatmul.bf16.gmra.mxu0 %v1415
    %v1542 = vpop.f32.mrf.mxu0
    %v1543 = vadd.f32 %v1443, %v1542
    %v1544 = vpop.f32.mrf.mxu0
    %v1545 = vadd.f32 %v1443, %v1544
    %1546 = vmatmul.bf16.gmra.mxu0 %v1416
    %v1547 = vpop.f32.mrf.mxu0
    %v1548 = vadd.f32 %v1443, %v1547
    %v1549 = vpop.f32.mrf.mxu0
    %v1550 = vadd.f32 %v1443, %v1549
    %1551 = vmatmul.bf16.gmra.mxu0 %v1417
    %v1552 = vpop.f32.mrf.mxu0
    %v1553 = vadd.f32 %v1443, %v1552
    %v1554 = vpop.f32.mrf.mxu0
    %v1555 = vadd.f32 %v1443, %v1554
    %1556 = vmatmul.bf16.gmra.mxu0 %v1418
    %v1557 = vpop.f32.mrf.mxu0
    %v1558 = vadd.f32 %v1443, %v1557
    %v1559 = vpop.f32.mrf.mxu0
    %v1560 = vadd.f32 %v1443, %v1559
    %1561 = vmatmul.bf16.gmra.mxu0 %v1419
    %v1562 = vpop.f32.mrf.mxu0
    %v1563 = vadd.f32 %v1443, %v1562
    %v1564 = vpop.f32.mrf.mxu0
    %v1565 = vadd.f32 %v1443, %v1564
    %1566 = vmatmul.bf16.gmra.mxu0 %v1420
    %v1567 = vpop.f32.mrf.mxu0
    %v1568 = vadd.f32 %v1443, %v1567
    %v1569 = vpop.f32.mrf.mxu0
    %v1570 = vadd.f32 %v1443, %v1569
    %1571 = vmatmul.bf16.gmra.mxu0 %v1421
    %v1572 = vpop.f32.mrf.mxu0
    %v1573 = vadd.f32 %v1443, %v1572
    %v1574 = vpop.f32.mrf.mxu0
    %v1575 = vadd.f32 %v1443, %v1574
    %1576 = vmatmul.bf16.gmra.mxu0 %v1422
    %v1577 = vpop.f32.mrf.mxu0
    %v1578 = vadd.f32 %v1443, %v1577
    %v1579 = vpop.f32.mrf.mxu0
    %v1580 = vadd.f32 %v1443, %v1579
    %1581 = vdwg.mxu0
    %v1582 = vmax.f32 %v1503, 0.0
    %v1583 = vmax.f32 %v1505, 0.0
    %v1584 = vmax.f32 %v1508, 0.0
    %v1585 = vmax.f32 %v1510, 0.0
    %v1586 = vmax.f32 %v1513, 0.0
    %v1587 = vmax.f32 %v1515, 0.0
    %v1588 = vmax.f32 %v1518, 0.0
    %v1589 = vmax.f32 %v1520, 0.0
    %v1590 = vmax.f32 %v1523, 0.0
    %v1591 = vmax.f32 %v1525, 0.0
    %v1592 = vmax.f32 %v1528, 0.0
    %v1593 = vmax.f32 %v1530, 0.0
    %v1594 = vmax.f32 %v1533, 0.0
    %v1595 = vmax.f32 %v1535, 0.0
    %v1596 = vmax.f32 %v1538, 0.0
    %v1597 = vmax.f32 %v1540, 0.0
    %v1598 = vmax.f32 %v1543, 0.0
    %v1599 = vmax.f32 %v1545, 0.0
    %v1600 = vmax.f32 %v1548, 0.0
    %v1601 = vmax.f32 %v1550, 0.0
    %v1602 = vmax.f32 %v1553, 0.0
    %v1603 = vmax.f32 %v1555, 0.0
    %v1604 = vmax.f32 %v1558, 0.0
    %v1605 = vmax.f32 %v1560, 0.0
    %v1606 = vmax.f32 %v1563, 0.0
    %v1607 = vmax.f32 %v1565, 0.0
    %v1608 = vmax.f32 %v1568, 0.0
    %v1609 = vmax.f32 %v1570, 0.0
    %v1610 = vmax.f32 %v1573, 0.0
    %v1611 = vmax.f32 %v1575, 0.0
    %v1612 = vmax.f32 %v1578, 0.0
    %v1613 = vmax.f32 %v1580, 0.0
    %v1614 = vpack.c.bf16 %v1583, %v1582
    %v1615 = vpack.c.bf16 %v1585, %v1584
    %v1616 = vpack.c.bf16 %v1587, %v1586
    %v1617 = vpack.c.bf16 %v1589, %v1588
    %v1618 = vpack.c.bf16 %v1591, %v1590
    %v1619 = vpack.c.bf16 %v1593, %v1592
    %v1620 = vpack.c.bf16 %v1595, %v1594
    %v1621 = vpack.c.bf16 %v1597, %v1596
    %v1622 = vpack.c.bf16 %v1599, %v1598
    %v1623 = vpack.c.bf16 %v1601, %v1600
    %v1624 = vpack.c.bf16 %v1603, %v1602
    %v1625 = vpack.c.bf16 %v1605, %v1604
    %v1626 = vpack.c.bf16 %v1607, %v1606
    %v1627 = vpack.c.bf16 %v1609, %v1608
    %v1628 = vpack.c.bf16 %v1611, %v1610
    %v1629 = vpack.c.bf16 %v1613, %v1612
    %s1630 = scalar_lea.vmem %s4, 128
    %v1631 = vld [vmem:[%s1630] sm:$0xf]
    %v1632 = vld [vmem:[%s1630 + $0x4] sm:$0xf]
    %v1633 = vld [vmem:[%s1630 + $0x8] sm:$0xf]
    %v1634 = vld [vmem:[%s1630 + $0xc] sm:$0xf]
    %v1635 = vld [vmem:[%s1630 + $0x10] sm:$0xf]
    %v1636 = vld [vmem:[%s1630 + $0x14] sm:$0xf]
    %v1637 = vld [vmem:[%s1630 + $0x18] sm:$0xf]
    %v1638 = vld [vmem:[%s1630 + $0x1c] sm:$0xf]
    %v1639 = vld [vmem:[%s1630 + $0x20] sm:$0xf]
    %v1640 = vld [vmem:[%s1630 + $0x24] sm:$0xf]
    %v1641 = vld [vmem:[%s1630 + $0x28] sm:$0xf]
    %v1642 = vld [vmem:[%s1630 + $0x2c] sm:$0xf]
    %v1643 = vld [vmem:[%s1630 + $0x30] sm:$0xf]
    %v1644 = vld [vmem:[%s1630 + $0x34] sm:$0xf]
    %v1645 = vld [vmem:[%s1630 + $0x38] sm:$0xf]
    %v1646 = vld [vmem:[%s1630 + $0x3c] sm:$0xf]
    %s1647 = scalar_lea.vmem %s5, 3
    %v1648 = vld [vmem:[%s1647] sm:$0x1]
    %v1650 = vperm.slane %v1648, 0
    %v1668 = vunpack.c.l.b16 %v1631
    %v1669 = vunpack.c.l.b16 %v1632
    %v1670 = vunpack.c.l.b16 %v1633
    %v1671 = vunpack.c.l.b16 %v1634
    %v1672 = vunpack.c.l.b16 %v1635
    %v1673 = vunpack.c.l.b16 %v1636
    %v1674 = vunpack.c.l.b16 %v1637
    %v1675 = vunpack.c.l.b16 %v1638
    %v1676 = vunpack.c.l.b16 %v1639
    %v1677 = vunpack.c.l.b16 %v1640
    %v1678 = vunpack.c.l.b16 %v1641
    %v1679 = vunpack.c.l.b16 %v1642
    %v1680 = vunpack.c.l.b16 %v1643
    %v1681 = vunpack.c.l.b16 %v1644
    %v1682 = vunpack.c.l.b16 %v1645
    %v1683 = vunpack.c.l.b16 %v1646
    %v1684 = vpack.c.b16 %v1669, %v1668
    %v1685 = vpack.c.b16 %v1671, %v1670
    %v1686 = vpack.c.b16 %v1673, %v1672
    %v1687 = vpack.c.b16 %v1675, %v1674
    %v1688 = vpack.c.b16 %v1677, %v1676
    %v1689 = vpack.c.b16 %v1679, %v1678
    %v1690 = vpack.c.b16 %v1681, %v1680
    %v1691 = vpack.c.b16 %v1683, %v1682
    %1700 = vmatpush.bf16.msra.mxu0 %v1691
    %1701 = vmatpush.bf16.msra.mxu0 %v1690
    %1702 = vmatpush.bf16.msra.mxu0 %v1689
    %1703 = vmatpush.bf16.msra.mxu0 %v1688
    %1704 = vmatpush.bf16.msra.mxu0 %v1687
    %1705 = vmatpush.bf16.msra.mxu0 %v1686
    %1706 = vmatpush.bf16.msra.mxu0 %v1685
    %1707 = vmatpush.bf16.msra.mxu0 %v1684
    %1708 = vmatmul.bf16.gmra.mxu0 %v1614
    %v1709 = vpop.f32.mrf.mxu0
    %v1710 = vadd.f32 %v1650, %v1709
    %v1711 = vpop.f32.mrf.mxu0
    %v1712 = vadd.f32 %v1650, %v1711
    %1713 = vmatmul.bf16.gmra.mxu0 %v1615
    %v1714 = vpop.f32.mrf.mxu0
    %v1715 = vadd.f32 %v1650, %v1714
    %v1716 = vpop.f32.mrf.mxu0
    %v1717 = vadd.f32 %v1650, %v1716
    %1718 = vmatmul.bf16.gmra.mxu0 %v1616
    %v1719 = vpop.f32.mrf.mxu0
    %v1720 = vadd.f32 %v1650, %v1719
    %v1721 = vpop.f32.mrf.mxu0
    %v1722 = vadd.f32 %v1650, %v1721
    %1723 = vmatmul.bf16.gmra.mxu0 %v1617
    %v1724 = vpop.f32.mrf.mxu0
    %v1725 = vadd.f32 %v1650, %v1724
    %v1726 = vpop.f32.mrf.mxu0
    %v1727 = vadd.f32 %v1650, %v1726
    %1728 = vmatmul.bf16.gmra.mxu0 %v1618
    %v1729 = vpop.f32.mrf.mxu0
    %v1730 = vadd.f32 %v1650, %v1729
    %v1731 = vpop.f32.mrf.mxu0
    %v1732 = vadd.f32 %v1650, %v1731
    %1733 = vmatmul.bf16.gmra.mxu0 %v1619
    %v1734 = vpop.f32.mrf.mxu0
    %v1735 = vadd.f32 %v1650, %v1734
    %v1736 = vpop.f32.mrf.mxu0
    %v1737 = vadd.f32 %v1650, %v1736
    %1738 = vmatmul.bf16.gmra.mxu0 %v1620
    %v1739 = vpop.f32.mrf.mxu0
    %v1740 = vadd.f32 %v1650, %v1739
    %v1741 = vpop.f32.mrf.mxu0
    %v1742 = vadd.f32 %v1650, %v1741
    %1743 = vmatmul.bf16.gmra.mxu0 %v1621
    %v1744 = vpop.f32.mrf.mxu0
    %v1745 = vadd.f32 %v1650, %v1744
    %v1746 = vpop.f32.mrf.mxu0
    %v1747 = vadd.f32 %v1650, %v1746
    %1748 = vmatmul.bf16.gmra.mxu0 %v1622
    %v1749 = vpop.f32.mrf.mxu0
    %v1750 = vadd.f32 %v1650, %v1749
    %v1751 = vpop.f32.mrf.mxu0
    %v1752 = vadd.f32 %v1650, %v1751
    %1753 = vmatmul.bf16.gmra.mxu0 %v1623
    %v1754 = vpop.f32.mrf.mxu0
    %v1755 = vadd.f32 %v1650, %v1754
    %v1756 = vpop.f32.mrf.mxu0
    %v1757 = vadd.f32 %v1650, %v1756
    %1758 = vmatmul.bf16.gmra.mxu0 %v1624
    %v1759 = vpop.f32.mrf.mxu0
    %v1760 = vadd.f32 %v1650, %v1759
    %v1761 = vpop.f32.mrf.mxu0
    %v1762 = vadd.f32 %v1650, %v1761
    %1763 = vmatmul.bf16.gmra.mxu0 %v1625
    %v1764 = vpop.f32.mrf.mxu0
    %v1765 = vadd.f32 %v1650, %v1764
    %v1766 = vpop.f32.mrf.mxu0
    %v1767 = vadd.f32 %v1650, %v1766
    %1768 = vmatmul.bf16.gmra.mxu0 %v1626
    %v1769 = vpop.f32.mrf.mxu0
    %v1770 = vadd.f32 %v1650, %v1769
    %v1771 = vpop.f32.mrf.mxu0
    %v1772 = vadd.f32 %v1650, %v1771
    %1773 = vmatmul.bf16.gmra.mxu0 %v1627
    %v1774 = vpop.f32.mrf.mxu0
    %v1775 = vadd.f32 %v1650, %v1774
    %v1776 = vpop.f32.mrf.mxu0
    %v1777 = vadd.f32 %v1650, %v1776
    %1778 = vmatmul.bf16.gmra.mxu0 %v1628
    %v1779 = vpop.f32.mrf.mxu0
    %v1780 = vadd.f32 %v1650, %v1779
    %v1781 = vpop.f32.mrf.mxu0
    %v1782 = vadd.f32 %v1650, %v1781
    %1783 = vmatmul.bf16.gmra.mxu0 %v1629
    %v1784 = vpop.f32.mrf.mxu0
    %v1785 = vadd.f32 %v1650, %v1784
    %v1786 = vpop.f32.mrf.mxu0
    %v1787 = vadd.f32 %v1650, %v1786
    %1788 = vdwg.mxu0
    %1821 = vrot.lane.b32.xlu0 %v916, 64
    %v1822 = vpop.permute.xlu0 %1821
    %1823 = vrot.lane.b32.xlu0 %v917, 64
    %v1824 = vpop.permute.xlu0 %1823
    %1825 = vrot.lane.b32.xlu0 %v918, 64
    %v1826 = vpop.permute.xlu0 %1825
    %1827 = vrot.lane.b32.xlu0 %v919, 64
    %v1828 = vpop.permute.xlu0 %1827
    %1829 = vrot.lane.b32.xlu0 %v920, 64
    %v1830 = vpop.permute.xlu0 %1829
    %1831 = vrot.lane.b32.xlu0 %v921, 64
    %v1832 = vpop.permute.xlu0 %1831
    %1833 = vrot.lane.b32.xlu0 %v922, 64
    %v1834 = vpop.permute.xlu0 %1833
    %1835 = vrot.lane.b32.xlu0 %v923, 64
    %v1836 = vpop.permute.xlu0 %1835
    %1837 = vrot.lane.b32.xlu0 %v924, 64
    %v1838 = vpop.permute.xlu0 %1837
    %1839 = vrot.lane.b32.xlu0 %v925, 64
    %v1840 = vpop.permute.xlu0 %1839
    %1841 = vrot.lane.b32.xlu0 %v926, 64
    %v1842 = vpop.permute.xlu0 %1841
    %1843 = vrot.lane.b32.xlu0 %v927, 64
    %v1844 = vpop.permute.xlu0 %1843
    %1845 = vrot.lane.b32.xlu0 %v928, 64
    %v1846 = vpop.permute.xlu0 %1845
    %1847 = vrot.lane.b32.xlu0 %v929, 64
    %v1848 = vpop.permute.xlu0 %1847
    %1849 = vrot.lane.b32.xlu0 %v930, 64
    %v1850 = vpop.permute.xlu0 %1849
    %1851 = vrot.lane.b32.xlu0 %v931, 64
    %v1852 = vpop.permute.xlu0 %1851
    %1853 = vrot.lane.b32.xlu0 %v932, 64
    %v1854 = vpop.permute.xlu0 %1853
    %1855 = vrot.lane.b32.xlu0 %v933, 64
    %v1856 = vpop.permute.xlu0 %1855
    %1857 = vrot.lane.b32.xlu0 %v934, 64
    %v1858 = vpop.permute.xlu0 %1857
    %1859 = vrot.lane.b32.xlu0 %v935, 64
    %v1860 = vpop.permute.xlu0 %1859
    %1861 = vrot.lane.b32.xlu0 %v936, 64
    %v1862 = vpop.permute.xlu0 %1861
    %1863 = vrot.lane.b32.xlu0 %v937, 64
    %v1864 = vpop.permute.xlu0 %1863
    %1865 = vrot.lane.b32.xlu0 %v938, 64
    %v1866 = vpop.permute.xlu0 %1865
    %1867 = vrot.lane.b32.xlu0 %v939, 64
    %v1868 = vpop.permute.xlu0 %1867
    %1869 = vrot.lane.b32.xlu0 %v940, 64
    %v1870 = vpop.permute.xlu0 %1869
    %1871 = vrot.lane.b32.xlu0 %v941, 64
    %v1872 = vpop.permute.xlu0 %1871
    %1873 = vrot.lane.b32.xlu0 %v942, 64
    %v1874 = vpop.permute.xlu0 %1873
    %1875 = vrot.lane.b32.xlu0 %v943, 64
    %v1876 = vpop.permute.xlu0 %1875
    %1877 = vrot.lane.b32.xlu0 %v944, 64
    %v1878 = vpop.permute.xlu0 %1877
    %1879 = vrot.lane.b32.xlu0 %v945, 64
    %v1880 = vpop.permute.xlu0 %1879
    %1881 = vrot.lane.b32.xlu0 %v946, 64
    %v1882 = vpop.permute.xlu0 %1881
    %1883 = vrot.lane.b32.xlu0 %v947, 64
    %v1884 = vpop.permute.xlu0 %1883
    %v1917 = vsel %vm109, %v916, %v1822
    %v1918 = vsel %vm109, %v917, %v1824
    %v1919 = vsel %vm109, %v918, %v1826
    %v1920 = vsel %vm109, %v919, %v1828
    %v1921 = vsel %vm109, %v920, %v1830
    %v1922 = vsel %vm109, %v921, %v1832
    %v1923 = vsel %vm109, %v922, %v1834
    %v1924 = vsel %vm109, %v923, %v1836
    %v1925 = vsel %vm109, %v924, %v1838
    %v1926 = vsel %vm109, %v925, %v1840
    %v1927 = vsel %vm109, %v926, %v1842
    %v1928 = vsel %vm109, %v927, %v1844
    %v1929 = vsel %vm109, %v928, %v1846
    %v1930 = vsel %vm109, %v929, %v1848
    %v1931 = vsel %vm109, %v930, %v1850
    %v1932 = vsel %vm109, %v931, %v1852
    %v1933 = vsel %vm109, %v932, %v1854
    %v1934 = vsel %vm109, %v933, %v1856
    %v1935 = vsel %vm109, %v934, %v1858
    %v1936 = vsel %vm109, %v935, %v1860
    %v1937 = vsel %vm109, %v936, %v1862
    %v1938 = vsel %vm109, %v937, %v1864
    %v1939 = vsel %vm109, %v938, %v1866
    %v1940 = vsel %vm109, %v939, %v1868
    %v1941 = vsel %vm109, %v940, %v1870
    %v1942 = vsel %vm109, %v941, %v1872
    %v1943 = vsel %vm109, %v942, %v1874
    %v1944 = vsel %vm109, %v943, %v1876
    %v1945 = vsel %vm109, %v944, %v1878
    %v1946 = vsel %vm109, %v945, %v1880
    %v1947 = vsel %vm109, %v946, %v1882
    %v1948 = vsel %vm109, %v947, %v1884
    %v1949 = vadd.f32 %v1710, %v1917
    %v1950 = vadd.f32 %v1712, %v1918
    %v1951 = vadd.f32 %v1715, %v1919
    %v1952 = vadd.f32 %v1717, %v1920
    %v1953 = vadd.f32 %v1720, %v1921
    %v1954 = vadd.f32 %v1722, %v1922
    %v1955 = vadd.f32 %v1725, %v1923
    %v1956 = vadd.f32 %v1727, %v1924
    %v1957 = vadd.f32 %v1730, %v1925
    %v1958 = vadd.f32 %v1732, %v1926
    %v1959 = vadd.f32 %v1735, %v1927
    %v1960 = vadd.f32 %v1737, %v1928
    %v1961 = vadd.f32 %v1740, %v1929
    %v1962 = vadd.f32 %v1742, %v1930
    %v1963 = vadd.f32 %v1745, %v1931
    %v1964 = vadd.f32 %v1747, %v1932
    %v1965 = vadd.f32 %v1750, %v1933
    %v1966 = vadd.f32 %v1752, %v1934
    %v1967 = vadd.f32 %v1755, %v1935
    %v1968 = vadd.f32 %v1757, %v1936
    %v1969 = vadd.f32 %v1760, %v1937
    %v1970 = vadd.f32 %v1762, %v1938
    %v1971 = vadd.f32 %v1765, %v1939
    %v1972 = vadd.f32 %v1767, %v1940
    %v1973 = vadd.f32 %v1770, %v1941
    %v1974 = vadd.f32 %v1772, %v1942
    %v1975 = vadd.f32 %v1775, %v1943
    %v1976 = vadd.f32 %v1777, %v1944
    %v1977 = vadd.f32 %v1780, %v1945
    %v1978 = vadd.f32 %v1782, %v1946
    %v1979 = vadd.f32 %v1785, %v1947
    %v1980 = vadd.f32 %v1787, %v1948
    %1981 = vst [vmem:[#allocation2] sm:$0xff] %v1949
    %1982 = vst [vmem:[#allocation2 + $0x8] sm:$0xff] %v1950
    %1983 = vst [vmem:[#allocation2 + $0x10] sm:$0xff] %v1951
    %1984 = vst [vmem:[#allocation2 + $0x18] sm:$0xff] %v1952
    %1985 = vst [vmem:[#allocation2 + $0x20] sm:$0xff] %v1953
    %1986 = vst [vmem:[#allocation2 + $0x28] sm:$0xff] %v1954
    %1987 = vst [vmem:[#allocation2 + $0x30] sm:$0xff] %v1955
    %1988 = vst [vmem:[#allocation2 + $0x38] sm:$0xff] %v1956
    %1989 = vst [vmem:[#allocation2 + $0x40] sm:$0xff] %v1957
    %1990 = vst [vmem:[#allocation2 + $0x48] sm:$0xff] %v1958
    %1991 = vst [vmem:[#allocation2 + $0x50] sm:$0xff] %v1959
    %1992 = vst [vmem:[#allocation2 + $0x58] sm:$0xff] %v1960
    %1993 = vst [vmem:[#allocation2 + $0x60] sm:$0xff] %v1961
    %1994 = vst [vmem:[#allocation2 + $0x68] sm:$0xff] %v1962
    %1995 = vst [vmem:[#allocation2 + $0x70] sm:$0xff] %v1963
    %1996 = vst [vmem:[#allocation2 + $0x78] sm:$0xff] %v1964
    %1997 = vst [vmem:[#allocation2 + $0x80] sm:$0xff] %v1965
    %1998 = vst [vmem:[#allocation2 + $0x88] sm:$0xff] %v1966
    %1999 = vst [vmem:[#allocation2 + $0x90] sm:$0xff] %v1967
    %2000 = vst [vmem:[#allocation2 + $0x98] sm:$0xff] %v1968
    %2001 = vst [vmem:[#allocation2 + $0xa0] sm:$0xff] %v1969
    %2002 = vst [vmem:[#allocation2 + $0xa8] sm:$0xff] %v1970
    %2003 = vst [vmem:[#allocation2 + $0xb0] sm:$0xff] %v1971
    %2004 = vst [vmem:[#allocation2 + $0xb8] sm:$0xff] %v1972
    %2005 = vst [vmem:[#allocation2 + $0xc0] sm:$0xff] %v1973
    %2006 = vst [vmem:[#allocation2 + $0xc8] sm:$0xff] %v1974
    %2007 = vst [vmem:[#allocation2 + $0xd0] sm:$0xff] %v1975
    %2008 = vst [vmem:[#allocation2 + $0xd8] sm:$0xff] %v1976
    %2009 = vst [vmem:[#allocation2 + $0xe0] sm:$0xff] %v1977
    %2010 = vst [vmem:[#allocation2 + $0xe8] sm:$0xff] %v1978
    %2011 = vst [vmem:[#allocation2 + $0xf0] sm:$0xff] %v1979
    %2012 = vst [vmem:[#allocation2 + $0xf8] sm:$0xff] %v1980
    // Predicated region
    $region26: #{tpu_custom_call.1} parent=1 // pred_check
      _
    $region27: #{tpu_custom_call.1} parent=1 // pred_check_branch
      %2014 = sbr.rel (0) target = $region29
    $region28: #{tpu_custom_call.1} parent=1 // pred_region
      %2016 = vsyncadd [#allocation3], 0
      %s2017 = sshll.u32 [#allocation2], 4
      %s2018 = int_to_ptr.vmem [resolvable:$true] %s2017
      %s2019 = sshll.u32 %s6, 4
      %s2020 = int_to_ptr.hbm [resolvable:$true] %s2019
      %2025 = dma.vmem_to_hbm [thread:$0]  %s2018, 4096, %s2020, [#allocation3], 128, 128, 8
    $region29: #{tpu_custom_call.1} parent=1 // pred_fallthru
      _
    // Predicated region
    $region30: #{tpu_custom_call.1} parent=1 // pred_check
      _
    $region31: #{tpu_custom_call.1} parent=1 // pred_check_branch
      %2027 = sbr.rel (0) target = $region33
    $region32: #{tpu_custom_call.1} parent=1 // pred_region
      %2029 = dma.done [#allocation3], 4096
    $region33: #{tpu_custom_call.1} parent=1 // pred_fallthru
      _
    %2030 = vsyncpa [#allocation3], 1

</llo_original>
